<compile_context>
chip_gen: v7x
topology: tpu7x:2x2x1
jax: 0.10.0
libtpu: 0.0.40
codegen_flags: <defaults>
</compile_context>

<pallas_src>
import numpy as np
import jax
import jax.numpy as jnp
from jax.experimental import pallas as pl
from jax.experimental.pallas import tpu as pltpu

# ----------------------------- model sizes ---------------------------------
N = 16        # pedestrians
K1 = 8        # ped neighbours
K2 = 8        # obstacle neighbours
DP = 4        # ped_feature_dim
DO = 6        # obs feature dim (obs encoder input is hard-coded to 6 in the module)
DS = 7        # self_feature_dim (module asserts == 7)
H = 32        # encoder / processor hidden size
D = 32        # decoder hidden size
TAU = 2.0

NK1 = N * K1
NK2 = N * K2
DIN = DP + DO + 2          # fused layer-1 width (+2 bias indicator columns)


# ------------------------------- kernel ------------------------------------
def pinnsf_kernel(x1_ref, self_ref, w1f_ref, w2s_ref, wdec_ref, qwf_ref, bias_ref,
                  pred_ref, pmsg_ref, omsg_ref, s_ref):
    f32 = jnp.float32
    bf16 = jnp.bfloat16
    n = pred_ref.shape[0]
    nk1 = pmsg_ref.shape[0]
    nk2 = omsg_ref.shape[0]
    h = pmsg_ref.shape[1]
    k1 = nk1 // n
    k2 = nk2 // n
    dd = wdec_ref.shape[1]          # = 2*decoder_hidden (== 2*encoder_hidden here)

    def mm(x, w):   # bf16 operands, f32 accumulation on the MXU
        return jnp.dot(x.astype(bf16), w, preferred_element_type=f32)

    # ---- encoder layer 1: ped + obs fused into one matmul (bias via indicators) ----
    a1 = jnp.maximum(
        jnp.dot(x1_ref[...], w1f_ref[...], preferred_element_type=f32), 0.0)

    # ---- unpack per-branch weights/biases (static, sublane-aligned slices) ----
    pw2 = w2s_ref[0 * h:1 * h, :]
    ow2 = w2s_ref[1 * h:2 * h, :]
    rwp = w2s_ref[2 * h:3 * h, :]
    rwo = w2s_ref[3 * h:4 * h, :]
    pb2 = bias_ref[0:1, :h]
    ob2 = bias_ref[1:2, :h]
    rbp = bias_ref[2:3, :h]
    rbo = bias_ref[3:4, :h]

    # ---- encoder layer 2 + processor ResBlock (weights differ per group) ----
    def enc2_proc(a, w2, b2, rw, rb):
        e = mm(a, w2) + b2
        return jnp.maximum(mm(e, rw) + rb, 0.0) + e

    msg_p = enc2_proc(a1[:nk1], pw2, pb2, rwp, rbp)
    msg_o = enc2_proc(a1[nk1:], ow2, ob2, rwo, rbo)
    pmsg_ref[...] = msg_p.astype(pmsg_ref.dtype)
    omsg_ref[...] = msg_o.astype(omsg_ref.dtype)

    # ---- sum over neighbours; pack [s_ped | s_obs] into scratch (lane concat) ----
    s_ref[:, :h] = jnp.sum(msg_p.reshape(n, k1, h), axis=1)
    s_ref[:, h:] = jnp.sum(msg_o.reshape(n, k2, h), axis=1)
    s_all = s_ref[...]                                            # (n, 2h)

    # ---- decoders + predictors, fused with block-diagonal weights ----
    dw1f = wdec_ref[:dd, :]
    dw2f = wdec_ref[dd:, :]
    bd1f = bias_ref[4:5, :]
    bd2f = bias_ref[5:6, :]
    bqf = bias_ref[6:7, :4]

    d1 = jnp.maximum(mm(s_all, dw1f) + bd1f, 0.0)
    d2 = mm(d1, dw2f) + bd2f
    pq = mm(d2, qwf_ref[...]) + bqf               # (n, 4): [ped polar | obs polar]

    # ---- polar -> cartesian and destination (social-force) term, f32 VPU/EUP ----
    sf = self_ref[...]
    vx = sf[:, 2:3]
    vy = sf[:, 3:4]
    inv_v = jax.lax.rsqrt(jnp.maximum(vx * vx + vy * vy, 1e-12))
    # TODO(synk): DATA.Pedestrians.get_heading_direction / polar_to_cart are external
    # to the spec; approximated as rotating the 2-D prediction by the unit heading.
    c = vx * inv_v
    s = vy * inv_v
    psum = pq[:, 0:2] + pq[:, 2:4]                # rotation is linear -> rotate once
    px = psum[:, 0:1] * c - psum[:, 1:2] * s
    py = psum[:, 0:1] * s + psum[:, 1:2] * c
    col2 = jax.lax.broadcasted_iota(jnp.int32, (n, 2), 1)
    acc_int = jnp.where(col2 == 0, px, py)

    pos = sf[:, 0:2]
    d2n = pos[:, 0:1] * pos[:, 0:1] + pos[:, 1:2] * pos[:, 1:2]
    inv_d = jnp.where(d2n > 0.0, jax.lax.rsqrt(d2n), 1.0 / 0.1)   # temp_[temp==0]=0.1
    vel = sf[:, 2:4]
    acc_dest = (sf[:, 6:7] * (pos * inv_d) - vel) * (1.0 / TAU)

    pred_ref[...] = (acc_int + acc_dest).astype(pred_ref.dtype)


# ------------------------------ wrapper -------------------------------------
def _blockdiag(a, b):
    za = jnp.zeros((a.shape[0], b.shape[1]), a.dtype)
    zb = jnp.zeros((b.shape[0], a.shape[1]), a.dtype)
    return jnp.concatenate(
        [jnp.concatenate([a, za], axis=1), jnp.concatenate([zb, b], axis=1)], axis=0)


def pinnsf_forward(ped, obs, selff, params):
    (pw1, pb1, pw2, pb2, ow1, ob1, ow2, ob2,
     rwp, rbp, rwo, rbo,
     dw1p, db1p, dw2p, db2p, dw1o, db1o, dw2o, db2o,
     qwp, qbp, qwo, qbo) = params
    n, k1, dp = ped.shape
    _, k2, do = obs.shape
    h = pw2.shape[0]
    d = dw2p.shape[0]            # decoder hidden (== h for this config)
    nk1, nk2 = n * k1, n * k2
    din = dp + do + 2
    bf16 = jnp.bfloat16

    # ---- host-side prep (tiny plain-XLA ops, folded by jit) ----
    # fused encoder layer-1 input:  ped rows = [x_ped | 0 | 1 0], obs rows = [0 | x_obs | 0 1]
    x1 = jnp.zeros((nk1 + nk2, din), jnp.float32)
    x1 = x1.at[:nk1, :dp].set(ped.reshape(nk1, dp))
    x1 = x1.at[:nk1, dp + do].set(1.0)
    x1 = x1.at[nk1:, dp:dp + do].set(obs.reshape(nk2, do))
    x1 = x1.at[nk1:, dp + do + 1].set(1.0)

    # packed weights (fewer pallas inputs -> fewer DMA streams)
    w1f = jnp.concatenate([pw1, ow1, pb1, ob1], axis=0)            # (din, h)
    w2s = jnp.concatenate([pw2, ow2, rwp, rwo], axis=0)            # (4h, h)
    wdec = jnp.concatenate([_blockdiag(dw1p, dw1o),                # (2h, 2d)
                            _blockdiag(dw2p, dw2o)], axis=0)       # + (2d, 2d)
    qwf = _blockdiag(qwp, qwo)                                     # (2d, 4)

    bias = jnp.zeros((8, 2 * d), jnp.float32)                      # all biases, one array
    bias = bias.at[0, :h].set(pb2[0]).at[1, :h].set(ob2[0])
    bias = bias.at[2, :h].set(rbp[0]).at[3, :h].set(rbo[0])
    bias = bias.at[4, :d].set(db1p[0]).at[4, d:].set(db1o[0])
    bias = bias.at[5, :d].set(db2p[0]).at[5, d:].set(db2o[0])
    bias = bias.at[6, 0:2].set(qbp[0]).at[6, 2:4].set(qbo[0])

    inputs = (x1.astype(bf16), selff,
              w1f.astype(bf16), w2s.astype(bf16), wdec.astype(bf16),
              qwf.astype(bf16), bias)

    # single grid step: whole problem lives in VMEM, per-step overhead dominates
    in_specs = [pl.BlockSpec(a.shape, lambda i: (0, 0)) for a in inputs]
    out_shape = (jax.ShapeDtypeStruct((n, 2), jnp.float32),
                 jax.ShapeDtypeStruct((nk1, h), jnp.float32),
                 jax.ShapeDtypeStruct((nk2, h), jnp.float32))
    out_specs = (pl.BlockSpec((n, 2), lambda i: (0, 0)),
                 pl.BlockSpec((nk1, h), lambda i: (0, 0)),
                 pl.BlockSpec((nk2, h), lambda i: (0, 0)))

    pred, pmsg, omsg = pl.pallas_call(
        pinnsf_kernel,
        out_shape=out_shape,
        grid=(1,),
        in_specs=in_specs,
        out_specs=out_specs,
        scratch_shapes=[pltpu.VMEM((n, 2 * h), jnp.float32)],
        compiler_params=pltpu.CompilerParams(
            dimension_semantics=("arbitrary",)),
    )(*inputs)
    return pred, pmsg.reshape(n, k1, h), omsg.reshape(n, k2, h)


# --------------------------- parameter init ---------------------------------
def dense_init(key, fan_in, fan_out):
    """PyTorch-style uniform(-1/sqrt(fan_in), 1/sqrt(fan_in)) init."""
    kw, kb = jax.random.split(key)
    bound = 1.0 / np.sqrt(fan_in)
    w = jax.random.uniform(kw, (fan_in, fan_out), jnp.float32, -bound, bound)
    b = jax.random.uniform(kb, (1, fan_out), jnp.float32, -bound, bound)
    return w, b


def make_params(key):
    ks = jax.random.split(key, 12)
    pw1, pb1 = dense_init(ks[0], DP, H)       # ped encoder L1
    pw2, pb2 = dense_init(ks[1], H, H)        # ped encoder L2
    ow1, ob1 = dense_init(ks[2], DO, H)       # obs encoder L1
    ow2, ob2 = dense_init(ks[3], H, H)        # obs encoder L2
    rwp, rbp = dense_init(ks[4], H, H)        # ped processor ResBlock
    rwo, rbo = dense_init(ks[5], H, H)        # obs processor ResBlock
    dw1p, db1p = dense_init(ks[6], H, D)      # ped decoder
    dw2p, db2p = dense_init(ks[7], D, D)
    dw1o, db1o = dense_init(ks[8], H, D)      # obs decoder
    dw2o, db2o = dense_init(ks[9], D, D)
    qwp, qbp = dense_init(ks[10], D, 2)       # ped predictor
    qwo, qbo = dense_init(ks[11], D, 2)       # obs predictor
    return (pw1, pb1, pw2, pb2, ow1, ob1, ow2, ob2,
            rwp, rbp, rwo, rbo,
            dw1p, db1p, dw2p, db2p, dw1o, db1o, dw2o, db2o,
            qwp, qbp, qwo, qbo)


# ------------------------ pure-JAX reference (validation) -------------------
def reference(ped, obs, sf, params):
    # Mirrors the PINNSF_polar forward; matmul operands are bf16-rounded with f32
    # accumulation to match the kernel's MXU path.
    (pw1, pb1, pw2, pb2, ow1, ob1, ow2, ob2,
     rwp, rbp, rwo, rbo,
     dw1p, db1p, dw2p, db2p, dw1o, db1o, dw2o, db2o,
     qwp, qbp, qwo, qbo) = params
    bf16, f32 = jnp.bfloat16, jnp.float32

    def mm(x, w):
        return jnp.dot(x.astype(bf16), w.astype(bf16), preferred_element_type=f32)

    def branch(x, w1, b1, w2, b2, rw, rb, dw1, db1, dw2, db2, qw, qb):
        a1 = jnp.maximum(mm(x, w1) + b1.astype(bf16).astype(f32), 0.0)   # enc L1
        e = mm(a1, w2) + b2                                              # enc L2
        msgs = jnp.maximum(mm(e, rw) + rb, 0.0) + e                      # ResBlock
        s = jnp.sum(msgs, axis=-2)                                       # sum over k
        d = mm(jnp.maximum(mm(s, dw1) + db1, 0.0), dw2) + db2            # decoder
        return mm(d, qw) + qb, msgs                                      # predictor

    p_ped, ped_msgs = branch(ped, pw1, pb1, pw2, pb2, rwp, rbp,
                             dw1p, db1p, dw2p, db2p, qwp, qbp)
    p_obs, obs_msgs = branch(obs, ow1, ob1, ow2, ob2, rwo, rbo,
                             dw1o, db1o, dw2o, db2o, qwo, qbo)

    vel = sf[:, 2:4]
    inv_v = jax.lax.rsqrt(
        jnp.maximum(jnp.sum(vel * vel, axis=1, keepdims=True), 1e-12))
    c, s = vel[:, 0:1] * inv_v, vel[:, 1:2] * inv_v

    def polar_to_cart(p):     # same heading-frame rotation as the kernel
        return jnp.concatenate([p[:, 0:1] * c - p[:, 1:2] * s,
                                p[:, 0:1] * s + p[:, 1:2] * c], axis=-1)

    acc = polar_to_cart(p_ped) + polar_to_cart(p_obs)
    pos = sf[:, 0:2]
    d2n = jnp.sum(pos * pos, axis=1, keepdims=True)
    inv_d = jnp.where(d2n > 0.0, jax.lax.rsqrt(d2n), 1.0 / 0.1)
    acc_dest = (sf[:, 6:7] * (pos * inv_d) - vel) / TAU
    return acc + acc_dest, ped_msgs, obs_msgs


# -------------------------------- main ---------------------------------------
if __name__ == "__main__":
    key = jax.random.PRNGKey(0)
    kp, ko, ks, kw = jax.random.split(key, 4)

    ped_features = jax.random.normal(kp, (N, K1, DP), jnp.float32)
    obs_features = jax.random.normal(ko, (N, K2, DO), jnp.float32)
    self_features = jax.random.normal(ks, (N, DS), jnp.float32)
    params = make_params(kw)

    fwd = jax.jit(pinnsf_forward)
    pred, ped_msgs, obs_msgs = jax.block_until_ready(
        fwd(ped_features, obs_features, self_features, params))

    ref_pred, ref_pmsg, ref_omsg = jax.block_until_ready(
        reference(ped_features, obs_features, self_features, params))

    np.testing.assert_allclose(np.asarray(pred), np.asarray(ref_pred),
                               rtol=2e-2, atol=2e-2)
    np.testing.assert_allclose(np.asarray(ped_msgs), np.asarray(ref_pmsg),
                               rtol=2e-2, atol=2e-2)
    np.testing.assert_allclose(np.asarray(obs_msgs), np.asarray(ref_omsg),
                               rtol=2e-2, atol=2e-2)

    print("KERNEL_OK")
</pallas_src>

<mosaic_0001>
module attributes {stable_mosaic.version = 11 : i64} {
  func.func @pinnsf_kernel(%arg0: i32, %arg1: memref<256x12xbf16, #tpu.memory_space<vmem>>, %arg2: memref<16x7xf32, #tpu.memory_space<vmem>>, %arg3: memref<12x32xbf16, #tpu.memory_space<vmem>>, %arg4: memref<128x32xbf16, #tpu.memory_space<vmem>>, %arg5: memref<128x64xbf16, #tpu.memory_space<vmem>>, %arg6: memref<64x4xbf16, #tpu.memory_space<vmem>>, %arg7: memref<8x64xf32, #tpu.memory_space<vmem>>, %arg8: memref<16x2xf32, #tpu.memory_space<vmem>>, %arg9: memref<128x32xf32, #tpu.memory_space<vmem>>, %arg10: memref<128x32xf32, #tpu.memory_space<vmem>>, %arg11: memref<16x64xf32, #tpu.memory_space<vmem>>) attributes {dimension_semantics = [#tpu.dimension_semantics<arbitrary>], iteration_bounds = array<i64: 1>, scalar_prefetch = 0 : i64, scratch_operands = 1 : i64, tpu.core_type = #tpu.core_type<tc>, window_params = [{pipeline_mode = #tpu.pipeline_mode<synchronous>, transform_indices = @transform_0, window_bounds = array<i64: 256, 12>}, {pipeline_mode = #tpu.pipeline_mode<synchronous>, transform_indices = @transform_1, window_bounds = array<i64: 16, 7>}, {pipeline_mode = #tpu.pipeline_mode<synchronous>, transform_indices = @transform_2, window_bounds = array<i64: 12, 32>}, {pipeline_mode = #tpu.pipeline_mode<synchronous>, transform_indices = @transform_3, window_bounds = array<i64: 128, 32>}, {pipeline_mode = #tpu.pipeline_mode<synchronous>, transform_indices = @transform_4, window_bounds = array<i64: 128, 64>}, {pipeline_mode = #tpu.pipeline_mode<synchronous>, transform_indices = @transform_5, window_bounds = array<i64: 64, 4>}, {pipeline_mode = #tpu.pipeline_mode<synchronous>, transform_indices = @transform_6, window_bounds = array<i64: 8, 64>}, {pipeline_mode = #tpu.pipeline_mode<synchronous>, transform_indices = @transform_7, window_bounds = array<i64: 16, 2>}, {pipeline_mode = #tpu.pipeline_mode<synchronous>, transform_indices = @transform_8, window_bounds = array<i64: 128, 32>}, {pipeline_mode = #tpu.pipeline_mode<synchronous>, transform_indices = @transform_9, window_bounds = array<i64: 128, 32>}]} {
    %c0 = arith.constant 0 : index
    %c0_0 = arith.constant 0 : index
    %0 = vector.load %arg1[%c0, %c0_0] : memref<256x12xbf16, #tpu.memory_space<vmem>>, vector<256x12xbf16>
    %c0_1 = arith.constant 0 : index
    %c0_2 = arith.constant 0 : index
    %1 = vector.load %arg3[%c0_1, %c0_2] : memref<12x32xbf16, #tpu.memory_space<vmem>>, vector<12x32xbf16>
    %cst = arith.constant dense<0.000000e+00> : vector<256x32xf32>
    %2 = tpu.matmul %0, %1, %cst {dimension_numbers = #tpu.dot_dimension_numbers<[1], [0], [0], [1], [0, 0, 1, 1], [], []>} : vector<256x12xbf16>, vector<12x32xbf16>, vector<256x32xf32> -> vector<256x32xf32>
    %cst_3 = arith.constant 0.000000e+00 : f32
    %3 = vector.broadcast %cst_3 : f32 to vector<256x32xf32>
    %4 = arith.maximumf %2, %3 : vector<256x32xf32>
    %c0_4 = arith.constant 0 : index
    %c0_5 = arith.constant 0 : index
    %5 = vector.load %arg4[%c0_4, %c0_5] : memref<128x32xbf16, #tpu.memory_space<vmem>>, vector<32x32xbf16>
    %c32 = arith.constant 32 : index
    %c0_6 = arith.constant 0 : index
    %6 = vector.load %arg4[%c32, %c0_6] : memref<128x32xbf16, #tpu.memory_space<vmem>>, vector<32x32xbf16>
    %c64 = arith.constant 64 : index
    %c0_7 = arith.constant 0 : index
    %7 = vector.load %arg4[%c64, %c0_7] : memref<128x32xbf16, #tpu.memory_space<vmem>>, vector<32x32xbf16>
    %c96 = arith.constant 96 : index
    %c0_8 = arith.constant 0 : index
    %8 = vector.load %arg4[%c96, %c0_8] : memref<128x32xbf16, #tpu.memory_space<vmem>>, vector<32x32xbf16>
    %c0_9 = arith.constant 0 : index
    %c0_10 = arith.constant 0 : index
    %9 = vector.load %arg7[%c0_9, %c0_10] : memref<8x64xf32, #tpu.memory_space<vmem>>, vector<1x32xf32>
    %c1 = arith.constant 1 : index
    %c0_11 = arith.constant 0 : index
    %10 = vector.load %arg7[%c1, %c0_11] : memref<8x64xf32, #tpu.memory_space<vmem>>, vector<1x32xf32>
    %c2 = arith.constant 2 : index
    %c0_12 = arith.constant 0 : index
    %11 = vector.load %arg7[%c2, %c0_12] : memref<8x64xf32, #tpu.memory_space<vmem>>, vector<1x32xf32>
    %c3 = arith.constant 3 : index
    %c0_13 = arith.constant 0 : index
    %12 = vector.load %arg7[%c3, %c0_13] : memref<8x64xf32, #tpu.memory_space<vmem>>, vector<1x32xf32>
    %13 = vector.extract_strided_slice %4 {offsets = [0, 0], sizes = [128, 32], strides = [1, 1]} : vector<256x32xf32> to vector<128x32xf32>
    %14 = arith.truncf %13 : vector<128x32xf32> to vector<128x32xbf16>
    %cst_14 = arith.constant dense<0.000000e+00> : vector<128x32xf32>
    %15 = tpu.matmul %14, %5, %cst_14 {dimension_numbers = #tpu.dot_dimension_numbers<[1], [0], [0], [1], [0, 0, 1, 1], [], []>} : vector<128x32xbf16>, vector<32x32xbf16>, vector<128x32xf32> -> vector<128x32xf32>
    %16 = vector.broadcast %9 : vector<1x32xf32> to vector<128x32xf32>
    %17 = arith.addf %15, %16 : vector<128x32xf32>
    %18 = arith.truncf %17 : vector<128x32xf32> to vector<128x32xbf16>
    %cst_15 = arith.constant dense<0.000000e+00> : vector<128x32xf32>
    %19 = tpu.matmul %18, %7, %cst_15 {dimension_numbers = #tpu.dot_dimension_numbers<[1], [0], [0], [1], [0, 0, 1, 1], [], []>} : vector<128x32xbf16>, vector<32x32xbf16>, vector<128x32xf32> -> vector<128x32xf32>
    %20 = vector.broadcast %11 : vector<1x32xf32> to vector<128x32xf32>
    %21 = arith.addf %19, %20 : vector<128x32xf32>
    %cst_16 = arith.constant 0.000000e+00 : f32
    %22 = vector.broadcast %cst_16 : f32 to vector<128x32xf32>
    %23 = arith.maximumf %21, %22 : vector<128x32xf32>
    %24 = arith.addf %23, %17 : vector<128x32xf32>
    %25 = vector.extract_strided_slice %4 {offsets = [128, 0], sizes = [128, 32], strides = [1, 1]} : vector<256x32xf32> to vector<128x32xf32>
    %26 = arith.truncf %25 : vector<128x32xf32> to vector<128x32xbf16>
    %cst_17 = arith.constant dense<0.000000e+00> : vector<128x32xf32>
    %27 = tpu.matmul %26, %6, %cst_17 {dimension_numbers = #tpu.dot_dimension_numbers<[1], [0], [0], [1], [0, 0, 1, 1], [], []>} : vector<128x32xbf16>, vector<32x32xbf16>, vector<128x32xf32> -> vector<128x32xf32>
    %28 = vector.broadcast %10 : vector<1x32xf32> to vector<128x32xf32>
    %29 = arith.addf %27, %28 : vector<128x32xf32>
    %30 = arith.truncf %29 : vector<128x32xf32> to vector<128x32xbf16>
    %cst_18 = arith.constant dense<0.000000e+00> : vector<128x32xf32>
    %31 = tpu.matmul %30, %8, %cst_18 {dimension_numbers = #tpu.dot_dimension_numbers<[1], [0], [0], [1], [0, 0, 1, 1], [], []>} : vector<128x32xbf16>, vector<32x32xbf16>, vector<128x32xf32> -> vector<128x32xf32>
    %32 = vector.broadcast %12 : vector<1x32xf32> to vector<128x32xf32>
    %33 = arith.addf %31, %32 : vector<128x32xf32>
    %cst_19 = arith.constant 0.000000e+00 : f32
    %34 = vector.broadcast %cst_19 : f32 to vector<128x32xf32>
    %35 = arith.maximumf %33, %34 : vector<128x32xf32>
    %36 = arith.addf %35, %29 : vector<128x32xf32>
    %c0_20 = arith.constant 0 : index
    %c0_21 = arith.constant 0 : index
    %37 = vector.load %arg9[%c0_20, %c0_21] : memref<128x32xf32, #tpu.memory_space<vmem>>, vector<128x32xf32>
    tpu.vector_store %arg9[%c0_20, %c0_21], %24 {strides = array<i32>} : memref<128x32xf32, #tpu.memory_space<vmem>>, vector<128x32xf32>,
    %c0_22 = arith.constant 0 : index
    %c0_23 = arith.constant 0 : index
    %38 = vector.load %arg10[%c0_22, %c0_23] : memref<128x32xf32, #tpu.memory_space<vmem>>, vector<128x32xf32>
    tpu.vector_store %arg10[%c0_22, %c0_23], %36 {strides = array<i32>} : memref<128x32xf32, #tpu.memory_space<vmem>>, vector<128x32xf32>,
    %39 = vector.shape_cast %24 : vector<128x32xf32> to vector<16x8x32xf32>
    %cst_24 = arith.constant dense<0.000000e+00> : vector<16x32xf32>
    %40 = vector.multi_reduction <add>, %39, %cst_24 [1] : vector<16x8x32xf32> to vector<16x32xf32>
    %c0_25 = arith.constant 0 : index
    %c0_26 = arith.constant 0 : index
    %41 = vector.load %arg11[%c0_25, %c0_26] : memref<16x64xf32, #tpu.memory_space<vmem>>, vector<16x32xf32>
    tpu.vector_store %arg11[%c0_25, %c0_26], %40 {strides = array<i32>} : memref<16x64xf32, #tpu.memory_space<vmem>>, vector<16x32xf32>,
    %42 = vector.shape_cast %36 : vector<128x32xf32> to vector<16x8x32xf32>
    %cst_27 = arith.constant dense<0.000000e+00> : vector<16x32xf32>
    %43 = vector.multi_reduction <add>, %42, %cst_27 [1] : vector<16x8x32xf32> to vector<16x32xf32>
    %c0_28 = arith.constant 0 : index
    %c32_29 = arith.constant 32 : index
    %44 = vector.load %arg11[%c0_28, %c32_29] : memref<16x64xf32, #tpu.memory_space<vmem>>, vector<16x32xf32>
    tpu.vector_store %arg11[%c0_28, %c32_29], %43 {strides = array<i32>} : memref<16x64xf32, #tpu.memory_space<vmem>>, vector<16x32xf32>,
    %c0_30 = arith.constant 0 : index
    %c0_31 = arith.constant 0 : index
    %45 = vector.load %arg11[%c0_30, %c0_31] : memref<16x64xf32, #tpu.memory_space<vmem>>, vector<16x64xf32>
    %c0_32 = arith.constant 0 : index
    %c0_33 = arith.constant 0 : index
    %46 = vector.load %arg5[%c0_32, %c0_33] : memref<128x64xbf16, #tpu.memory_space<vmem>>, vector<64x64xbf16>
    %c64_34 = arith.constant 64 : index
    %c0_35 = arith.constant 0 : index
    %47 = vector.load %arg5[%c64_34, %c0_35] : memref<128x64xbf16, #tpu.memory_space<vmem>>, vector<64x64xbf16>
    %c4 = arith.constant 4 : index
    %c0_36 = arith.constant 0 : index
    %48 = vector.load %arg7[%c4, %c0_36] : memref<8x64xf32, #tpu.memory_space<vmem>>, vector<1x64xf32>
    %c5 = arith.constant 5 : index
    %c0_37 = arith.constant 0 : index
    %49 = vector.load %arg7[%c5, %c0_37] : memref<8x64xf32, #tpu.memory_space<vmem>>, vector<1x64xf32>
    %c6 = arith.constant 6 : index
    %c0_38 = arith.constant 0 : index
    %50 = vector.load %arg7[%c6, %c0_38] : memref<8x64xf32, #tpu.memory_space<vmem>>, vector<1x4xf32>
    %51 = arith.truncf %45 : vector<16x64xf32> to vector<16x64xbf16>
    %cst_39 = arith.constant dense<0.000000e+00> : vector<16x64xf32>
    %52 = tpu.matmul %51, %46, %cst_39 {dimension_numbers = #tpu.dot_dimension_numbers<[1], [0], [0], [1], [0, 0, 1, 1], [], []>} : vector<16x64xbf16>, vector<64x64xbf16>, vector<16x64xf32> -> vector<16x64xf32>
    %53 = vector.broadcast %48 : vector<1x64xf32> to vector<16x64xf32>
    %54 = arith.addf %52, %53 : vector<16x64xf32>
    %cst_40 = arith.constant 0.000000e+00 : f32
    %55 = vector.broadcast %cst_40 : f32 to vector<16x64xf32>
    %56 = arith.maximumf %54, %55 : vector<16x64xf32>
    %57 = arith.truncf %56 : vector<16x64xf32> to vector<16x64xbf16>
    %cst_41 = arith.constant dense<0.000000e+00> : vector<16x64xf32>
    %58 = tpu.matmul %57, %47, %cst_41 {dimension_numbers = #tpu.dot_dimension_numbers<[1], [0], [0], [1], [0, 0, 1, 1], [], []>} : vector<16x64xbf16>, vector<64x64xbf16>, vector<16x64xf32> -> vector<16x64xf32>
    %59 = vector.broadcast %49 : vector<1x64xf32> to vector<16x64xf32>
    %60 = arith.addf %58, %59 : vector<16x64xf32>
    %c0_42 = arith.constant 0 : index
    %c0_43 = arith.constant 0 : index
    %61 = vector.load %arg6[%c0_42, %c0_43] : memref<64x4xbf16, #tpu.memory_space<vmem>>, vector<64x4xbf16>
    %62 = arith.truncf %60 : vector<16x64xf32> to vector<16x64xbf16>
    %cst_44 = arith.constant dense<0.000000e+00> : vector<16x4xf32>
    %63 = tpu.matmul %62, %61, %cst_44 {dimension_numbers = #tpu.dot_dimension_numbers<[1], [0], [0], [1], [0, 0, 1, 1], [], []>} : vector<16x64xbf16>, vector<64x4xbf16>, vector<16x4xf32> -> vector<16x4xf32>
    %64 = vector.broadcast %50 : vector<1x4xf32> to vector<16x4xf32>
    %65 = arith.addf %63, %64 : vector<16x4xf32>
    %c0_45 = arith.constant 0 : index
    %c0_46 = arith.constant 0 : index
    %66 = vector.load %arg2[%c0_45, %c0_46] : memref<16x7xf32, #tpu.memory_space<vmem>>, vector<16x7xf32>
    %67 = vector.extract_strided_slice %66 {offsets = [0, 2], sizes = [16, 1], strides = [1, 1]} : vector<16x7xf32> to vector<16x1xf32>
    %68 = vector.extract_strided_slice %66 {offsets = [0, 3], sizes = [16, 1], strides = [1, 1]} : vector<16x7xf32> to vector<16x1xf32>
    %69 = arith.mulf %67, %67 : vector<16x1xf32>
    %70 = arith.mulf %68, %68 : vector<16x1xf32>
    %71 = arith.addf %69, %70 : vector<16x1xf32>
    %cst_47 = arith.constant 9.99999996E-13 : f32
    %72 = vector.broadcast %cst_47 : f32 to vector<16x1xf32>
    %73 = arith.maximumf %71, %72 : vector<16x1xf32>
    %74 = math.rsqrt %73 : vector<16x1xf32>
    %75 = arith.mulf %67, %74 : vector<16x1xf32>
    %76 = arith.mulf %68, %74 : vector<16x1xf32>
    %77 = vector.extract_strided_slice %65 {offsets = [0, 0], sizes = [16, 2], strides = [1, 1]} : vector<16x4xf32> to vector<16x2xf32>
    %78 = vector.extract_strided_slice %65 {offsets = [0, 2], sizes = [16, 2], strides = [1, 1]} : vector<16x4xf32> to vector<16x2xf32>
    %79 = arith.addf %77, %78 : vector<16x2xf32>
    %80 = vector.extract_strided_slice %79 {offsets = [0, 0], sizes = [16, 1], strides = [1, 1]} : vector<16x2xf32> to vector<16x1xf32>
    %81 = arith.mulf %80, %75 : vector<16x1xf32>
    %82 = vector.extract_strided_slice %79 {offsets = [0, 1], sizes = [16, 1], strides = [1, 1]} : vector<16x2xf32> to vector<16x1xf32>
    %83 = arith.mulf %82, %76 : vector<16x1xf32>
    %84 = arith.subf %81, %83 : vector<16x1xf32>
    %85 = vector.extract_strided_slice %79 {offsets = [0, 0], sizes = [16, 1], strides = [1, 1]} : vector<16x2xf32> to vector<16x1xf32>
    %86 = arith.mulf %85, %76 : vector<16x1xf32>
    %87 = vector.extract_strided_slice %79 {offsets = [0, 1], sizes = [16, 1], strides = [1, 1]} : vector<16x2xf32> to vector<16x1xf32>
    %88 = arith.mulf %87, %75 : vector<16x1xf32>
    %89 = arith.addf %86, %88 : vector<16x1xf32>
    %90 = tpu.iota {dimensions = array<i32: 1>} : vector<16x2xi32>
    %c0_i32 = arith.constant 0 : i32
    %91 = vector.broadcast %c0_i32 : i32 to vector<16x2xi32>
    %92 = arith.cmpi eq, %90, %91 : vector<16x2xi32>
    %93 = vector.shape_cast %84 : vector<16x1xf32> to vector<16x1xf32>
    %94 = vector.broadcast %93 : vector<16x1xf32> to vector<16x2xf32>
    %95 = vector.shape_cast %89 : vector<16x1xf32> to vector<16x1xf32>
    %96 = vector.broadcast %95 : vector<16x1xf32> to vector<16x2xf32>
    %97 = arith.select %92, %94, %96 : vector<16x2xi1>, vector<16x2xf32>
    %98 = vector.extract_strided_slice %66 {offsets = [0, 0], sizes = [16, 2], strides = [1, 1]} : vector<16x7xf32> to vector<16x2xf32>
    %99 = vector.extract_strided_slice %98 {offsets = [0, 0], sizes = [16, 1], strides = [1, 1]} : vector<16x2xf32> to vector<16x1xf32>
    %100 = vector.extract_strided_slice %98 {offsets = [0, 0], sizes = [16, 1], strides = [1, 1]} : vector<16x2xf32> to vector<16x1xf32>
    %101 = arith.mulf %99, %100 : vector<16x1xf32>
    %102 = vector.extract_strided_slice %98 {offsets = [0, 1], sizes = [16, 1], strides = [1, 1]} : vector<16x2xf32> to vector<16x1xf32>
    %103 = vector.extract_strided_slice %98 {offsets = [0, 1], sizes = [16, 1], strides = [1, 1]} : vector<16x2xf32> to vector<16x1xf32>
    %104 = arith.mulf %102, %103 : vector<16x1xf32>
    %105 = arith.addf %101, %104 : vector<16x1xf32>
    %cst_48 = arith.constant 0.000000e+00 : f32
    %106 = vector.broadcast %cst_48 : f32 to vector<16x1xf32>
    %107 = arith.cmpf ogt, %105, %106 : vector<16x1xf32>
    %108 = math.rsqrt %105 : vector<16x1xf32>
    %cst_49 = arith.constant 1.000000e+01 : f32
    %109 = vector.broadcast %cst_49 : f32 to vector<16x1xf32>
    %110 = arith.select %107, %108, %109 : vector<16x1xi1>, vector<16x1xf32>
    %111 = vector.extract_strided_slice %66 {offsets = [0, 2], sizes = [16, 2], strides = [1, 1]} : vector<16x7xf32> to vector<16x2xf32>
    %112 = vector.extract_strided_slice %66 {offsets = [0, 6], sizes = [16, 1], strides = [1, 1]} : vector<16x7xf32> to vector<16x1xf32>
    %113 = vector.broadcast %110 : vector<16x1xf32> to vector<16x2xf32>
    %114 = arith.mulf %98, %113 : vector<16x2xf32>
    %115 = vector.broadcast %112 : vector<16x1xf32> to vector<16x2xf32>
    %116 = arith.mulf %115, %114 : vector<16x2xf32>
    %117 = arith.subf %116, %111 : vector<16x2xf32>
    %cst_50 = arith.constant 5.000000e-01 : f32
    %118 = vector.broadcast %cst_50 : f32 to vector<16x2xf32>
    %119 = arith.mulf %117, %118 : vector<16x2xf32>
    %120 = arith.addf %97, %119 : vector<16x2xf32>
    %c0_51 = arith.constant 0 : index
    %c0_52 = arith.constant 0 : index
    %121 = vector.load %arg8[%c0_51, %c0_52] : memref<16x2xf32, #tpu.memory_space<vmem>>, vector<16x2xf32>
    tpu.vector_store %arg8[%c0_51, %c0_52], %120 {strides = array<i32>} : memref<16x2xf32, #tpu.memory_space<vmem>>, vector<16x2xf32>,
    return
  }
  func.func @transform_0(%arg0: i32) -> (i32, i32) {
    %c0_i32 = arith.constant 0 : i32
    %c0_i32_0 = arith.constant 0 : i32
    %c0_i32_1 = arith.constant 0 : i32
    return %c0_i32, %c0_i32_0 : i32, i32
  }
  func.func @transform_1(%arg0: i32) -> (i32, i32) {
    %c0_i32 = arith.constant 0 : i32
    %c0_i32_0 = arith.constant 0 : i32
    %c0_i32_1 = arith.constant 0 : i32
    return %c0_i32, %c0_i32_0 : i32, i32
  }
  func.func @transform_2(%arg0: i32) -> (i32, i32) {
    %c0_i32 = arith.constant 0 : i32
    %c0_i32_0 = arith.constant 0 : i32
    %c0_i32_1 = arith.constant 0 : i32
    return %c0_i32, %c0_i32_0 : i32, i32
  }
  func.func @transform_3(%arg0: i32) -> (i32, i32) {
    %c0_i32 = arith.constant 0 : i32
    %c0_i32_0 = arith.constant 0 : i32
    %c0_i32_1 = arith.constant 0 : i32
    return %c0_i32, %c0_i32_0 : i32, i32
  }
  func.func @transform_4(%arg0: i32) -> (i32, i32) {
    %c0_i32 = arith.constant 0 : i32
    %c0_i32_0 = arith.constant 0 : i32
    %c0_i32_1 = arith.constant 0 : i32
    return %c0_i32, %c0_i32_0 : i32, i32
  }
  func.func @transform_5(%arg0: i32) -> (i32, i32) {
    %c0_i32 = arith.constant 0 : i32
    %c0_i32_0 = arith.constant 0 : i32
    %c0_i32_1 = arith.constant 0 : i32
    return %c0_i32, %c0_i32_0 : i32, i32
  }
  func.func @transform_6(%arg0: i32) -> (i32, i32) {
    %c0_i32 = arith.constant 0 : i32
    %c0_i32_0 = arith.constant 0 : i32
    %c0_i32_1 = arith.constant 0 : i32
    return %c0_i32, %c0_i32_0 : i32, i32
  }
  func.func @transform_7(%arg0: i32) -> (i32, i32) {
    %c0_i32 = arith.constant 0 : i32
    %c0_i32_0 = arith.constant 0 : i32
    %c0_i32_1 = arith.constant 0 : i32
    return %c0_i32, %c0_i32_0 : i32, i32
  }
  func.func @transform_8(%arg0: i32) -> (i32, i32) {
    %c0_i32 = arith.constant 0 : i32
    %c0_i32_0 = arith.constant 0 : i32
    %c0_i32_1 = arith.constant 0 : i32
    return %c0_i32, %c0_i32_0 : i32, i32
  }
  func.func @transform_9(%arg0: i32) -> (i32, i32) {
    %c0_i32 = arith.constant 0 : i32
    %c0_i32_0 = arith.constant 0 : i32
    %c0_i32_1 = arith.constant 0 : i32
    return %c0_i32, %c0_i32_0 : i32, i32
  }
}

</mosaic_0001>

<llo_original>
// kernel: pinnsf_forward.1
$region0: #{pinnsf_forward.1}
  #allocation0 [shape = 'u32[]', space=smem, size = 0x4, offset = 0x4, fixed_abs, tag = 'smem constant byte address 0x4 - core index']
  #allocation1 [shape = 'u32[144,128]{1,0:T(1,128)}', space=vmem, size = 0x12000, scoped, tag = 'internal scratch']
  #allocation2 [shape = 'f32[16,64]{1,0:T(8,128)}', space=vmem, size = 0x2000, scoped, tag = 'scratch operand']
  %s0 = inlined_call_operand.vmem [shape: bf16[256,12], index: 0, kind: input, shape index: {}]
  %s1 = inlined_call_operand.vmem [shape: f32[16,7], index: 1, kind: input, shape index: {}]
  %s2 = inlined_call_operand.vmem [shape: bf16[12,32], index: 2, kind: input, shape index: {}]
  %s3 = inlined_call_operand.vmem [shape: bf16[128,32], index: 3, kind: input, shape index: {}]
  %s4 = inlined_call_operand.vmem [shape: bf16[128,64], index: 4, kind: input, shape index: {}]
  %s5 = inlined_call_operand.vmem [shape: bf16[64,4], index: 5, kind: input, shape index: {}]
  %s6 = inlined_call_operand.vmem [shape: f32[8,64], index: 6, kind: input, shape index: {}]
  %s7 = inlined_call_operand.vmem [shape: f32[16,2], index: 7, kind: output, shape index: {0}]
  %s8 = inlined_call_operand.hbm [shape: f32[128,32], index: 8, kind: output, shape index: {1}]
  %s9 = inlined_call_operand.hbm [shape: f32[128,32], index: 9, kind: output, shape index: {2}]
  %10 = xla_tuple %s7, %s8, %s9
  %s11 = sld [smem:[#allocation0]]
  $region54: #{pinnsf_forward.1} parent=0
    _
  %s13 = ssub.s32 1, %s11
  %s14 = scalar_select 0, %s13, %s11
  $region1: #{pinnsf_forward.1} parent=0
    #allocation3 [shape = 'u8[65536]{0}', space=vmem, size = 0x10000, scoped, tag = 'output window, operand 1, single buffered']
    #allocation4 [shape = 's32[1]{0}', space=sflag, size = 0x4, scoped, tag = 'scoped memory for pinnsf_forward.1']
    #allocation5 [shape = 'u8[65536]{0}', space=vmem, size = 0x10000, scoped, tag = 'output window, operand 2, single buffered']
    #allocation6 [shape = 's32[1]{0}', space=sflag, size = 0x4, scoped, tag = 'scoped memory for pinnsf_forward.1']
    %15 = vsyncpa [#allocation4], 0
    %16 = vsyncpa [#allocation6], 0
    // Predicated region
    $region2: #{pinnsf_forward.1} parent=1 // pred_check
      _
    $region3: #{pinnsf_forward.1} parent=1 // pred_check_branch
      %18 = sbr.rel (0) target = $region5
    $region4: #{pinnsf_forward.1} parent=1 // pred_region
      _
    $region5: #{pinnsf_forward.1} parent=1 // pred_fallthru
      _
    // Predicated region
    $region6: #{pinnsf_forward.1} parent=1 // pred_check
      _
    $region7: #{pinnsf_forward.1} parent=1 // pred_check_branch
      %20 = sbr.rel (0) target = $region9
    $region8: #{pinnsf_forward.1} parent=1 // pred_region
      _
    $region9: #{pinnsf_forward.1} parent=1 // pred_fallthru
      _
    // Predicated region
    $region10: #{pinnsf_forward.1} parent=1 // pred_check
      _
    $region11: #{pinnsf_forward.1} parent=1 // pred_check_branch
      %22 = sbr.rel (0) target = $region13
    $region12: #{pinnsf_forward.1} parent=1 // pred_region
      _
    $region13: #{pinnsf_forward.1} parent=1 // pred_fallthru
      _
    // Predicated region
    $region14: #{pinnsf_forward.1} parent=1 // pred_check
      _
    $region15: #{pinnsf_forward.1} parent=1 // pred_check_branch
      %24 = sbr.rel (0) target = $region17
    $region16: #{pinnsf_forward.1} parent=1 // pred_region
      _
    $region17: #{pinnsf_forward.1} parent=1 // pred_fallthru
      _
    // Predicated region
    $region18: #{pinnsf_forward.1} parent=1 // pred_check
      _
    $region19: #{pinnsf_forward.1} parent=1 // pred_check_branch
      %26 = sbr.rel (0) target = $region21
    $region20: #{pinnsf_forward.1} parent=1 // pred_region
      _
    $region21: #{pinnsf_forward.1} parent=1 // pred_fallthru
      _
    // Predicated region
    $region22: #{pinnsf_forward.1} parent=1 // pred_check
      _
    $region23: #{pinnsf_forward.1} parent=1 // pred_check_branch
      %28 = sbr.rel (0) target = $region25
    $region24: #{pinnsf_forward.1} parent=1 // pred_region
      _
    $region25: #{pinnsf_forward.1} parent=1 // pred_fallthru
      _
    // Predicated region
    $region26: #{pinnsf_forward.1} parent=1 // pred_check
      _
    $region27: #{pinnsf_forward.1} parent=1 // pred_check_branch
      %30 = sbr.rel (0) target = $region29
    $region28: #{pinnsf_forward.1} parent=1 // pred_region
      _
    $region29: #{pinnsf_forward.1} parent=1 // pred_fallthru
      _
    %v32 = vld [vmem:[%s0] sm:$0xf]
    %v33 = vld [vmem:[%s0 + $0x4] sm:$0xf]
    %v34 = vld [vmem:[%s0 + $0x8] sm:$0xf]
    %v35 = vld [vmem:[%s0 + $0xc] sm:$0xf]
    %v36 = vld [vmem:[%s0 + $0x10] sm:$0xf]
    %v37 = vld [vmem:[%s0 + $0x14] sm:$0xf]
    %v38 = vld [vmem:[%s0 + $0x18] sm:$0xf]
    %v39 = vld [vmem:[%s0 + $0x1c] sm:$0xf]
    %v40 = vld [vmem:[%s0 + $0x20] sm:$0xf]
    %v41 = vld [vmem:[%s0 + $0x24] sm:$0xf]
    %v42 = vld [vmem:[%s0 + $0x28] sm:$0xf]
    %v43 = vld [vmem:[%s0 + $0x2c] sm:$0xf]
    %v44 = vld [vmem:[%s0 + $0x30] sm:$0xf]
    %v45 = vld [vmem:[%s0 + $0x34] sm:$0xf]
    %v46 = vld [vmem:[%s0 + $0x38] sm:$0xf]
    %v47 = vld [vmem:[%s0 + $0x3c] sm:$0xf]
    %v48 = vld [vmem:[%s0 + $0x40] sm:$0xf]
    %v49 = vld [vmem:[%s0 + $0x44] sm:$0xf]
    %v50 = vld [vmem:[%s0 + $0x48] sm:$0xf]
    %v51 = vld [vmem:[%s0 + $0x4c] sm:$0xf]
    %v52 = vld [vmem:[%s0 + $0x50] sm:$0xf]
    %v53 = vld [vmem:[%s0 + $0x54] sm:$0xf]
    %v54 = vld [vmem:[%s0 + $0x58] sm:$0xf]
    %v55 = vld [vmem:[%s0 + $0x5c] sm:$0xf]
    %v56 = vld [vmem:[%s0 + $0x60] sm:$0xf]
    %v57 = vld [vmem:[%s0 + $0x64] sm:$0xf]
    %v58 = vld [vmem:[%s0 + $0x68] sm:$0xf]
    %v59 = vld [vmem:[%s0 + $0x6c] sm:$0xf]
    %v60 = vld [vmem:[%s0 + $0x70] sm:$0xf]
    %v61 = vld [vmem:[%s0 + $0x74] sm:$0xf]
    %v62 = vld [vmem:[%s0 + $0x78] sm:$0xf]
    %v63 = vld [vmem:[%s0 + $0x7c] sm:$0xf]
    %v64 = vld [vmem:[%s2] sm:$0xf]
    %v65 = vld [vmem:[%s2 + $0x4] sm:$0x3]
    %v98 = vunpack.c.l.b16 %v32
    %v99 = vunpack.c.l.b16 %v33
    %v100 = vunpack.c.l.b16 %v34
    %v101 = vunpack.c.l.b16 %v35
    %v102 = vunpack.c.l.b16 %v36
    %v103 = vunpack.c.l.b16 %v37
    %v104 = vunpack.c.l.b16 %v38
    %v105 = vunpack.c.l.b16 %v39
    %v106 = vunpack.c.l.b16 %v40
    %v107 = vunpack.c.l.b16 %v41
    %v108 = vunpack.c.l.b16 %v42
    %v109 = vunpack.c.l.b16 %v43
    %v110 = vunpack.c.l.b16 %v44
    %v111 = vunpack.c.l.b16 %v45
    %v112 = vunpack.c.l.b16 %v46
    %v113 = vunpack.c.l.b16 %v47
    %v114 = vunpack.c.l.b16 %v48
    %v115 = vunpack.c.l.b16 %v49
    %v116 = vunpack.c.l.b16 %v50
    %v117 = vunpack.c.l.b16 %v51
    %v118 = vunpack.c.l.b16 %v52
    %v119 = vunpack.c.l.b16 %v53
    %v120 = vunpack.c.l.b16 %v54
    %v121 = vunpack.c.l.b16 %v55
    %v122 = vunpack.c.l.b16 %v56
    %v123 = vunpack.c.l.b16 %v57
    %v124 = vunpack.c.l.b16 %v58
    %v125 = vunpack.c.l.b16 %v59
    %v126 = vunpack.c.l.b16 %v60
    %v127 = vunpack.c.l.b16 %v61
    %v128 = vunpack.c.l.b16 %v62
    %v129 = vunpack.c.l.b16 %v63
    %v130 = vpack.c.b16 %v99, %v98
    %v131 = vpack.c.b16 %v101, %v100
    %v132 = vpack.c.b16 %v103, %v102
    %v133 = vpack.c.b16 %v105, %v104
    %v134 = vpack.c.b16 %v107, %v106
    %v135 = vpack.c.b16 %v109, %v108
    %v136 = vpack.c.b16 %v111, %v110
    %v137 = vpack.c.b16 %v113, %v112
    %v138 = vpack.c.b16 %v115, %v114
    %v139 = vpack.c.b16 %v117, %v116
    %v140 = vpack.c.b16 %v119, %v118
    %v141 = vpack.c.b16 %v121, %v120
    %v142 = vpack.c.b16 %v123, %v122
    %v143 = vpack.c.b16 %v125, %v124
    %v144 = vpack.c.b16 %v127, %v126
    %v145 = vpack.c.b16 %v129, %v128
    %v148 = vunpack.c.l.b16 %v64
    %v149 = vunpack.c.l.b16 %v65
    %v150 = vpack.c.b16 %v149, %v148
    %vm151 = vcmask 97280
    %v153 = vsel %vm151, %v130, 0
    %v156 = vsel %vm151, %v131, 0
    %v159 = vsel %vm151, %v132, 0
    %v162 = vsel %vm151, %v133, 0
    %v165 = vsel %vm151, %v134, 0
    %v168 = vsel %vm151, %v135, 0
    %v171 = vsel %vm151, %v136, 0
    %v174 = vsel %vm151, %v137, 0
    %v177 = vsel %vm151, %v138, 0
    %v180 = vsel %vm151, %v139, 0
    %v183 = vsel %vm151, %v140, 0
    %v186 = vsel %vm151, %v141, 0
    %v189 = vsel %vm151, %v142, 0
    %v192 = vsel %vm151, %v143, 0
    %v195 = vsel %vm151, %v144, 0
    %v198 = vsel %vm151, %v145, 0
    %vm200 = vcmask 1045504
    %v202 = vsel %vm200, %v150, 0
    %204 = vmatprep.subr.bf16.mxu0 0
    %205 = vmatpush1.bf16.msra.mxu0 %v202
    %206 = vmatprep.subr.bf16.mxu0 0
    %207 = vmatpush1.bf16.msra.mxu0 0
    %208 = vmatprep.subr.bf16.mxu0 0
    %209 = vmatpush1.bf16.msra.mxu0 0
    %210 = vmatprep.subr.bf16.mxu0 0
    %211 = vmatpush1.bf16.msra.mxu0 0
    %212 = vmatprep.subr.bf16.mxu0 0
    %213 = vmatpush1.bf16.msra.mxu0 0
    %214 = vmatprep.subr.bf16.mxu0 0
    %215 = vmatpush1.bf16.msra.mxu0 0
    %216 = vmatprep.subr.bf16.mxu0 0
    %217 = vmatpush1.bf16.msra.mxu0 0
    %218 = vmatprep.subr.bf16.mxu0 0
    %219 = vmatpush1.bf16.msra.mxu0 0
    %220 = vmatprep.subr.bf16.mxu0 0
    %221 = vmatpush1.bf16.msra.mxu0 0
    %222 = vmatprep.subr.bf16.mxu0 0
    %223 = vmatpush1.bf16.msra.mxu0 0
    %224 = vmatprep.subr.bf16.mxu0 0
    %225 = vmatpush1.bf16.msra.mxu0 0
    %226 = vmatprep.subr.bf16.mxu0 0
    %227 = vmatpush1.bf16.msra.mxu0 0
    %228 = vmatprep.subr.bf16.mxu0 0
    %229 = vmatpush1.bf16.msra.mxu0 0
    %230 = vmatprep.subr.bf16.mxu0 0
    %231 = vmatpush1.bf16.msra.mxu0 0
    %232 = vmatprep.subr.bf16.mxu0 0
    %233 = vmatpush1.bf16.msra.mxu0 0
    %234 = vmatprep.subr.bf16.mxu0 0
    %235 = vmatpush1.bf16.msra.mxu0 0
    %236 = vmatprep.mubr.bf16.mxu0 0
    %237 = vmatmul.mubr.bf16.gmra.mrb[0].mxu0 %v153
    %v238 = vpop.f32.mrb[0].mxu0
    %v239 = vadd.f32 0.0, %v238
    %v240 = vpop.f32.mrb[0].mxu0
    %v241 = vpop.f32.mrb[0].mxu0
    %v242 = vadd.f32 0.0, %v241
    %v243 = vpop.f32.mrb[0].mxu0
    %244 = vmatprep.mubr.bf16.mxu0 0
    %245 = vmatmul.mubr.bf16.gmra.mrb[0].mxu0 %v156
    %v246 = vpop.f32.mrb[0].mxu0
    %v247 = vadd.f32 0.0, %v246
    %v248 = vpop.f32.mrb[0].mxu0
    %v249 = vpop.f32.mrb[0].mxu0
    %v250 = vadd.f32 0.0, %v249
    %v251 = vpop.f32.mrb[0].mxu0
    %252 = vmatprep.mubr.bf16.mxu0 0
    %253 = vmatmul.mubr.bf16.gmra.mrb[0].mxu0 %v159
    %v254 = vpop.f32.mrb[0].mxu0
    %v255 = vadd.f32 0.0, %v254
    %v256 = vpop.f32.mrb[0].mxu0
    %v257 = vpop.f32.mrb[0].mxu0
    %v258 = vadd.f32 0.0, %v257
    %v259 = vpop.f32.mrb[0].mxu0
    %260 = vmatprep.mubr.bf16.mxu0 0
    %261 = vmatmul.mubr.bf16.gmra.mrb[0].mxu0 %v162
    %v262 = vpop.f32.mrb[0].mxu0
    %v263 = vadd.f32 0.0, %v262
    %v264 = vpop.f32.mrb[0].mxu0
    %v265 = vpop.f32.mrb[0].mxu0
    %v266 = vadd.f32 0.0, %v265
    %v267 = vpop.f32.mrb[0].mxu0
    %268 = vmatprep.mubr.bf16.mxu0 0
    %269 = vmatmul.mubr.bf16.gmra.mrb[0].mxu0 %v165
    %v270 = vpop.f32.mrb[0].mxu0
    %v271 = vadd.f32 0.0, %v270
    %v272 = vpop.f32.mrb[0].mxu0
    %v273 = vpop.f32.mrb[0].mxu0
    %v274 = vadd.f32 0.0, %v273
    %v275 = vpop.f32.mrb[0].mxu0
    %276 = vmatprep.mubr.bf16.mxu0 0
    %277 = vmatmul.mubr.bf16.gmra.mrb[0].mxu0 %v168
    %v278 = vpop.f32.mrb[0].mxu0
    %v279 = vadd.f32 0.0, %v278
    %v280 = vpop.f32.mrb[0].mxu0
    %v281 = vpop.f32.mrb[0].mxu0
    %v282 = vadd.f32 0.0, %v281
    %v283 = vpop.f32.mrb[0].mxu0
    %284 = vmatprep.mubr.bf16.mxu0 0
    %285 = vmatmul.mubr.bf16.gmra.mrb[0].mxu0 %v171
    %v286 = vpop.f32.mrb[0].mxu0
    %v287 = vadd.f32 0.0, %v286
    %v288 = vpop.f32.mrb[0].mxu0
    %v289 = vpop.f32.mrb[0].mxu0
    %v290 = vadd.f32 0.0, %v289
    %v291 = vpop.f32.mrb[0].mxu0
    %292 = vmatprep.mubr.bf16.mxu0 0
    %293 = vmatmul.mubr.bf16.gmra.mrb[0].mxu0 %v174
    %v294 = vpop.f32.mrb[0].mxu0
    %v295 = vadd.f32 0.0, %v294
    %v296 = vpop.f32.mrb[0].mxu0
    %v297 = vpop.f32.mrb[0].mxu0
    %v298 = vadd.f32 0.0, %v297
    %v299 = vpop.f32.mrb[0].mxu0
    %300 = vmatprep.mubr.bf16.mxu0 0
    %301 = vmatmul.mubr.bf16.gmra.mrb[0].mxu0 %v177
    %v302 = vpop.f32.mrb[0].mxu0
    %v303 = vadd.f32 0.0, %v302
    %v304 = vpop.f32.mrb[0].mxu0
    %v305 = vpop.f32.mrb[0].mxu0
    %v306 = vadd.f32 0.0, %v305
    %v307 = vpop.f32.mrb[0].mxu0
    %308 = vmatprep.mubr.bf16.mxu0 0
    %309 = vmatmul.mubr.bf16.gmra.mrb[0].mxu0 %v180
    %v310 = vpop.f32.mrb[0].mxu0
    %v311 = vadd.f32 0.0, %v310
    %v312 = vpop.f32.mrb[0].mxu0
    %v313 = vpop.f32.mrb[0].mxu0
    %v314 = vadd.f32 0.0, %v313
    %v315 = vpop.f32.mrb[0].mxu0
    %316 = vmatprep.mubr.bf16.mxu0 0
    %317 = vmatmul.mubr.bf16.gmra.mrb[0].mxu0 %v183
    %v318 = vpop.f32.mrb[0].mxu0
    %v319 = vadd.f32 0.0, %v318
    %v320 = vpop.f32.mrb[0].mxu0
    %v321 = vpop.f32.mrb[0].mxu0
    %v322 = vadd.f32 0.0, %v321
    %v323 = vpop.f32.mrb[0].mxu0
    %324 = vmatprep.mubr.bf16.mxu0 0
    %325 = vmatmul.mubr.bf16.gmra.mrb[0].mxu0 %v186
    %v326 = vpop.f32.mrb[0].mxu0
    %v327 = vadd.f32 0.0, %v326
    %v328 = vpop.f32.mrb[0].mxu0
    %v329 = vpop.f32.mrb[0].mxu0
    %v330 = vadd.f32 0.0, %v329
    %v331 = vpop.f32.mrb[0].mxu0
    %332 = vmatprep.mubr.bf16.mxu0 0
    %333 = vmatmul.mubr.bf16.gmra.mrb[0].mxu0 %v189
    %v334 = vpop.f32.mrb[0].mxu0
    %v335 = vadd.f32 0.0, %v334
    %v336 = vpop.f32.mrb[0].mxu0
    %v337 = vpop.f32.mrb[0].mxu0
    %v338 = vadd.f32 0.0, %v337
    %v339 = vpop.f32.mrb[0].mxu0
    %340 = vmatprep.mubr.bf16.mxu0 0
    %341 = vmatmul.mubr.bf16.gmra.mrb[0].mxu0 %v192
    %v342 = vpop.f32.mrb[0].mxu0
    %v343 = vadd.f32 0.0, %v342
    %v344 = vpop.f32.mrb[0].mxu0
    %v345 = vpop.f32.mrb[0].mxu0
    %v346 = vadd.f32 0.0, %v345
    %v347 = vpop.f32.mrb[0].mxu0
    %348 = vmatprep.mubr.bf16.mxu0 0
    %349 = vmatmul.mubr.bf16.gmra.mrb[0].mxu0 %v195
    %v350 = vpop.f32.mrb[0].mxu0
    %v351 = vadd.f32 0.0, %v350
    %v352 = vpop.f32.mrb[0].mxu0
    %v353 = vpop.f32.mrb[0].mxu0
    %v354 = vadd.f32 0.0, %v353
    %v355 = vpop.f32.mrb[0].mxu0
    %356 = vmatprep.mubr.bf16.mxu0 0
    %357 = vmatmul.mubr.bf16.gmra.mrb[0].mxu0 %v198
    %v358 = vpop.f32.mrb[0].mxu0
    %v359 = vadd.f32 0.0, %v358
    %v360 = vpop.f32.mrb[0].mxu0
    %v361 = vpop.f32.mrb[0].mxu0
    %v362 = vadd.f32 0.0, %v361
    %v363 = vpop.f32.mrb[0].mxu0
    %364 = vdwg.mxu0
    %v365 = vmax.f32 %v239, 0.0
    %v366 = vmax.f32 %v242, 0.0
    %v367 = vmax.f32 %v247, 0.0
    %v368 = vmax.f32 %v250, 0.0
    %v369 = vmax.f32 %v255, 0.0
    %v370 = vmax.f32 %v258, 0.0
    %v371 = vmax.f32 %v263, 0.0
    %v372 = vmax.f32 %v266, 0.0
    %v373 = vmax.f32 %v271, 0.0
    %v374 = vmax.f32 %v274, 0.0
    %v375 = vmax.f32 %v279, 0.0
    %v376 = vmax.f32 %v282, 0.0
    %v377 = vmax.f32 %v287, 0.0
    %v378 = vmax.f32 %v290, 0.0
    %v379 = vmax.f32 %v295, 0.0
    %v380 = vmax.f32 %v298, 0.0
    %v381 = vmax.f32 %v303, 0.0
    %v382 = vmax.f32 %v306, 0.0
    %v383 = vmax.f32 %v311, 0.0
    %v384 = vmax.f32 %v314, 0.0
    %v385 = vmax.f32 %v319, 0.0
    %v386 = vmax.f32 %v322, 0.0
    %v387 = vmax.f32 %v327, 0.0
    %v388 = vmax.f32 %v330, 0.0
    %v389 = vmax.f32 %v335, 0.0
    %v390 = vmax.f32 %v338, 0.0
    %v391 = vmax.f32 %v343, 0.0
    %v392 = vmax.f32 %v346, 0.0
    %v393 = vmax.f32 %v351, 0.0
    %v394 = vmax.f32 %v354, 0.0
    %v395 = vmax.f32 %v359, 0.0
    %v396 = vmax.f32 %v362, 0.0
    %v397 = vld [vmem:[%s3] sm:$0xf]
    %v398 = vld [vmem:[%s3 + $0x4] sm:$0xf]
    %v399 = vld [vmem:[%s3 + $0x8] sm:$0xf]
    %v400 = vld [vmem:[%s3 + $0xc] sm:$0xf]
    %v401 = vld [vmem:[%s3 + $0x10] sm:$0xf]
    %v402 = vld [vmem:[%s3 + $0x14] sm:$0xf]
    %v403 = vld [vmem:[%s3 + $0x18] sm:$0xf]
    %v404 = vld [vmem:[%s3 + $0x1c] sm:$0xf]
    %v405 = vld [vmem:[%s3 + $0x20] sm:$0xf]
    %v406 = vld [vmem:[%s3 + $0x24] sm:$0xf]
    %v407 = vld [vmem:[%s3 + $0x28] sm:$0xf]
    %v408 = vld [vmem:[%s3 + $0x2c] sm:$0xf]
    %v409 = vld [vmem:[%s3 + $0x30] sm:$0xf]
    %v410 = vld [vmem:[%s3 + $0x34] sm:$0xf]
    %v411 = vld [vmem:[%s3 + $0x38] sm:$0xf]
    %v412 = vld [vmem:[%s3 + $0x3c] sm:$0xf]
    %v413 = vld [vmem:[%s6] sm:$0x1]
    %v414 = vld [vmem:[%s6 + $0x1] sm:$0x1]
    %v415 = vld [vmem:[%s6 + $0x2] sm:$0x1]
    %v416 = vld [vmem:[%s6 + $0x3] sm:$0x1]
    %v417 = vpack.c.bf16 %v366, %v365
    %v418 = vpack.c.bf16 %v368, %v367
    %v419 = vpack.c.bf16 %v370, %v369
    %v420 = vpack.c.bf16 %v372, %v371
    %v421 = vpack.c.bf16 %v374, %v373
    %v422 = vpack.c.bf16 %v376, %v375
    %v423 = vpack.c.bf16 %v378, %v377
    %v424 = vpack.c.bf16 %v380, %v379
    %v425 = vlaneseq
    %v426 = vshrl.u32 %v425, 7
    %v427 = vsub.s32 0, %v426
    %v428 = vrot.slane %v413, %v427
    %v433 = vunpack.c.l.b16 %v397
    %v434 = vunpack.c.l.b16 %v398
    %v435 = vunpack.c.l.b16 %v399
    %v436 = vunpack.c.l.b16 %v400
    %v437 = vpack.c.b16 %v434, %v433
    %v438 = vpack.c.b16 %v436, %v435
    %vm441 = vcmask 261120
    %v443 = vsel %vm441, %v417, 0
    %v446 = vsel %vm441, %v418, 0
    %v449 = vsel %vm441, %v419, 0
    %v452 = vsel %vm441, %v420, 0
    %v455 = vsel %vm441, %v421, 0
    %v458 = vsel %vm441, %v422, 0
    %v461 = vsel %vm441, %v423, 0
    %v464 = vsel %vm441, %v424, 0
    %466 = vmatprep.subr.bf16.mxu0 0
    %467 = vmatpush1.bf16.msra.mxu0 %v437
    %468 = vmatprep.subr.bf16.mxu0 0
    %469 = vmatpush1.bf16.msra.mxu0 %v438
    %470 = vmatprep.subr.bf16.mxu0 0
    %471 = vmatpush1.bf16.msra.mxu0 0
    %472 = vmatprep.subr.bf16.mxu0 0
    %473 = vmatpush1.bf16.msra.mxu0 0
    %474 = vmatprep.subr.bf16.mxu0 0
    %475 = vmatpush1.bf16.msra.mxu0 0
    %476 = vmatprep.subr.bf16.mxu0 0
    %477 = vmatpush1.bf16.msra.mxu0 0
    %478 = vmatprep.subr.bf16.mxu0 0
    %479 = vmatpush1.bf16.msra.mxu0 0
    %480 = vmatprep.subr.bf16.mxu0 0
    %481 = vmatpush1.bf16.msra.mxu0 0
    %482 = vmatprep.subr.bf16.mxu0 0
    %483 = vmatpush1.bf16.msra.mxu0 0
    %484 = vmatprep.subr.bf16.mxu0 0
    %485 = vmatpush1.bf16.msra.mxu0 0
    %486 = vmatprep.subr.bf16.mxu0 0
    %487 = vmatpush1.bf16.msra.mxu0 0
    %488 = vmatprep.subr.bf16.mxu0 0
    %489 = vmatpush1.bf16.msra.mxu0 0
    %490 = vmatprep.subr.bf16.mxu0 0
    %491 = vmatpush1.bf16.msra.mxu0 0
    %492 = vmatprep.subr.bf16.mxu0 0
    %493 = vmatpush1.bf16.msra.mxu0 0
    %494 = vmatprep.subr.bf16.mxu0 0
    %495 = vmatpush1.bf16.msra.mxu0 0
    %496 = vmatprep.subr.bf16.mxu0 0
    %497 = vmatpush1.bf16.msra.mxu0 0
    %498 = vmatprep.mubr.bf16.mxu0 0
    %499 = vmatmul.mubr.bf16.gmra.mrb[0].mxu0 %v443
    %v500 = vpop.f32.mrb[0].mxu0
    %v501 = vadd.f32 %v428, %v500
    %v502 = vpop.f32.mrb[0].mxu0
    %v503 = vpop.f32.mrb[0].mxu0
    %v504 = vadd.f32 %v428, %v503
    %v505 = vpop.f32.mrb[0].mxu0
    %506 = vmatprep.mubr.bf16.mxu0 0
    %507 = vmatmul.mubr.bf16.gmra.mrb[0].mxu0 %v446
    %v508 = vpop.f32.mrb[0].mxu0
    %v509 = vadd.f32 %v428, %v508
    %v510 = vpop.f32.mrb[0].mxu0
    %v511 = vpop.f32.mrb[0].mxu0
    %v512 = vadd.f32 %v428, %v511
    %v513 = vpop.f32.mrb[0].mxu0
    %514 = vmatprep.mubr.bf16.mxu0 0
    %515 = vmatmul.mubr.bf16.gmra.mrb[0].mxu0 %v449
    %v516 = vpop.f32.mrb[0].mxu0
    %v517 = vadd.f32 %v428, %v516
    %v518 = vpop.f32.mrb[0].mxu0
    %v519 = vpop.f32.mrb[0].mxu0
    %v520 = vadd.f32 %v428, %v519
    %v521 = vpop.f32.mrb[0].mxu0
    %522 = vmatprep.mubr.bf16.mxu0 0
    %523 = vmatmul.mubr.bf16.gmra.mrb[0].mxu0 %v452
    %v524 = vpop.f32.mrb[0].mxu0
    %v525 = vadd.f32 %v428, %v524
    %v526 = vpop.f32.mrb[0].mxu0
    %v527 = vpop.f32.mrb[0].mxu0
    %v528 = vadd.f32 %v428, %v527
    %v529 = vpop.f32.mrb[0].mxu0
    %530 = vmatprep.mubr.bf16.mxu0 0
    %531 = vmatmul.mubr.bf16.gmra.mrb[0].mxu0 %v455
    %v532 = vpop.f32.mrb[0].mxu0
    %v533 = vadd.f32 %v428, %v532
    %v534 = vpop.f32.mrb[0].mxu0
    %v535 = vpop.f32.mrb[0].mxu0
    %v536 = vadd.f32 %v428, %v535
    %v537 = vpop.f32.mrb[0].mxu0
    %538 = vmatprep.mubr.bf16.mxu0 0
    %539 = vmatmul.mubr.bf16.gmra.mrb[0].mxu0 %v458
    %v540 = vpop.f32.mrb[0].mxu0
    %v541 = vadd.f32 %v428, %v540
    %v542 = vpop.f32.mrb[0].mxu0
    %v543 = vpop.f32.mrb[0].mxu0
    %v544 = vadd.f32 %v428, %v543
    %v545 = vpop.f32.mrb[0].mxu0
    %546 = vmatprep.mubr.bf16.mxu0 0
    %547 = vmatmul.mubr.bf16.gmra.mrb[0].mxu0 %v461
    %v548 = vpop.f32.mrb[0].mxu0
    %v549 = vadd.f32 %v428, %v548
    %v550 = vpop.f32.mrb[0].mxu0
    %v551 = vpop.f32.mrb[0].mxu0
    %v552 = vadd.f32 %v428, %v551
    %v553 = vpop.f32.mrb[0].mxu0
    %554 = vmatprep.mubr.bf16.mxu0 0
    %555 = vmatmul.mubr.bf16.gmra.mrb[0].mxu0 %v464
    %v556 = vpop.f32.mrb[0].mxu0
    %v557 = vadd.f32 %v428, %v556
    %v558 = vpop.f32.mrb[0].mxu0
    %v559 = vpop.f32.mrb[0].mxu0
    %v560 = vadd.f32 %v428, %v559
    %v561 = vpop.f32.mrb[0].mxu0
    %562 = vdwg.mxu0
    %v563 = vpack.c.bf16 %v504, %v501
    %v564 = vpack.c.bf16 %v512, %v509
    %v565 = vpack.c.bf16 %v520, %v517
    %v566 = vpack.c.bf16 %v528, %v525
    %v567 = vpack.c.bf16 %v536, %v533
    %v568 = vpack.c.bf16 %v544, %v541
    %v569 = vpack.c.bf16 %v552, %v549
    %v570 = vpack.c.bf16 %v560, %v557
    %v571 = vlaneseq
    %v572 = vshrl.u32 %v571, 7
    %v573 = vsub.s32 0, %v572
    %v574 = vrot.slane %v415, %v573
    %v579 = vunpack.c.l.b16 %v405
    %v580 = vunpack.c.l.b16 %v406
    %v581 = vunpack.c.l.b16 %v407
    %v582 = vunpack.c.l.b16 %v408
    %v583 = vpack.c.b16 %v580, %v579
    %v584 = vpack.c.b16 %v582, %v581
    %v588 = vsel %vm441, %v563, 0
    %v591 = vsel %vm441, %v564, 0
    %v594 = vsel %vm441, %v565, 0
    %v597 = vsel %vm441, %v566, 0
    %v600 = vsel %vm441, %v567, 0
    %v603 = vsel %vm441, %v568, 0
    %v606 = vsel %vm441, %v569, 0
    %v609 = vsel %vm441, %v570, 0
    %611 = vmatprep.subr.bf16.mxu0 0
    %612 = vmatpush1.bf16.msra.mxu0 %v583
    %613 = vmatprep.subr.bf16.mxu0 0
    %614 = vmatpush1.bf16.msra.mxu0 %v584
    %615 = vmatprep.subr.bf16.mxu0 0
    %616 = vmatpush1.bf16.msra.mxu0 0
    %617 = vmatprep.subr.bf16.mxu0 0
    %618 = vmatpush1.bf16.msra.mxu0 0
    %619 = vmatprep.subr.bf16.mxu0 0
    %620 = vmatpush1.bf16.msra.mxu0 0
    %621 = vmatprep.subr.bf16.mxu0 0
    %622 = vmatpush1.bf16.msra.mxu0 0
    %623 = vmatprep.subr.bf16.mxu0 0
    %624 = vmatpush1.bf16.msra.mxu0 0
    %625 = vmatprep.subr.bf16.mxu0 0
    %626 = vmatpush1.bf16.msra.mxu0 0
    %627 = vmatprep.subr.bf16.mxu0 0
    %628 = vmatpush1.bf16.msra.mxu0 0
    %629 = vmatprep.subr.bf16.mxu0 0
    %630 = vmatpush1.bf16.msra.mxu0 0
    %631 = vmatprep.subr.bf16.mxu0 0
    %632 = vmatpush1.bf16.msra.mxu0 0
    %633 = vmatprep.subr.bf16.mxu0 0
    %634 = vmatpush1.bf16.msra.mxu0 0
    %635 = vmatprep.subr.bf16.mxu0 0
    %636 = vmatpush1.bf16.msra.mxu0 0
    %637 = vmatprep.subr.bf16.mxu0 0
    %638 = vmatpush1.bf16.msra.mxu0 0
    %639 = vmatprep.subr.bf16.mxu0 0
    %640 = vmatpush1.bf16.msra.mxu0 0
    %641 = vmatprep.subr.bf16.mxu0 0
    %642 = vmatpush1.bf16.msra.mxu0 0
    %643 = vmatprep.mubr.bf16.mxu0 0
    %644 = vmatmul.mubr.bf16.gmra.mrb[0].mxu0 %v588
    %v645 = vpop.f32.mrb[0].mxu0
    %v646 = vadd.f32 %v574, %v645
    %v647 = vpop.f32.mrb[0].mxu0
    %v648 = vpop.f32.mrb[0].mxu0
    %v649 = vadd.f32 %v574, %v648
    %v650 = vpop.f32.mrb[0].mxu0
    %651 = vmatprep.mubr.bf16.mxu0 0
    %652 = vmatmul.mubr.bf16.gmra.mrb[0].mxu0 %v591
    %v653 = vpop.f32.mrb[0].mxu0
    %v654 = vadd.f32 %v574, %v653
    %v655 = vpop.f32.mrb[0].mxu0
    %v656 = vpop.f32.mrb[0].mxu0
    %v657 = vadd.f32 %v574, %v656
    %v658 = vpop.f32.mrb[0].mxu0
    %659 = vmatprep.mubr.bf16.mxu0 0
    %660 = vmatmul.mubr.bf16.gmra.mrb[0].mxu0 %v594
    %v661 = vpop.f32.mrb[0].mxu0
    %v662 = vadd.f32 %v574, %v661
    %v663 = vpop.f32.mrb[0].mxu0
    %v664 = vpop.f32.mrb[0].mxu0
    %v665 = vadd.f32 %v574, %v664
    %v666 = vpop.f32.mrb[0].mxu0
    %667 = vmatprep.mubr.bf16.mxu0 0
    %668 = vmatmul.mubr.bf16.gmra.mrb[0].mxu0 %v597
    %v669 = vpop.f32.mrb[0].mxu0
    %v670 = vadd.f32 %v574, %v669
    %v671 = vpop.f32.mrb[0].mxu0
    %v672 = vpop.f32.mrb[0].mxu0
    %v673 = vadd.f32 %v574, %v672
    %v674 = vpop.f32.mrb[0].mxu0
    %675 = vmatprep.mubr.bf16.mxu0 0
    %676 = vmatmul.mubr.bf16.gmra.mrb[0].mxu0 %v600
    %v677 = vpop.f32.mrb[0].mxu0
    %v678 = vadd.f32 %v574, %v677
    %v679 = vpop.f32.mrb[0].mxu0
    %v680 = vpop.f32.mrb[0].mxu0
    %v681 = vadd.f32 %v574, %v680
    %v682 = vpop.f32.mrb[0].mxu0
    %683 = vmatprep.mubr.bf16.mxu0 0
    %684 = vmatmul.mubr.bf16.gmra.mrb[0].mxu0 %v603
    %v685 = vpop.f32.mrb[0].mxu0
    %v686 = vadd.f32 %v574, %v685
    %v687 = vpop.f32.mrb[0].mxu0
    %v688 = vpop.f32.mrb[0].mxu0
    %v689 = vadd.f32 %v574, %v688
    %v690 = vpop.f32.mrb[0].mxu0
    %691 = vmatprep.mubr.bf16.mxu0 0
    %692 = vmatmul.mubr.bf16.gmra.mrb[0].mxu0 %v606
    %v693 = vpop.f32.mrb[0].mxu0
    %v694 = vadd.f32 %v574, %v693
    %v695 = vpop.f32.mrb[0].mxu0
    %v696 = vpop.f32.mrb[0].mxu0
    %v697 = vadd.f32 %v574, %v696
    %v698 = vpop.f32.mrb[0].mxu0
    %699 = vmatprep.mubr.bf16.mxu0 0
    %700 = vmatmul.mubr.bf16.gmra.mrb[0].mxu0 %v609
    %v701 = vpop.f32.mrb[0].mxu0
    %v702 = vadd.f32 %v574, %v701
    %v703 = vpop.f32.mrb[0].mxu0
    %v704 = vpop.f32.mrb[0].mxu0
    %v705 = vadd.f32 %v574, %v704
    %v706 = vpop.f32.mrb[0].mxu0
    %707 = vdwg.mxu0
    %v708 = vmax.f32 %v646, 0.0
    %v709 = vmax.f32 %v649, 0.0
    %v710 = vmax.f32 %v654, 0.0
    %v711 = vmax.f32 %v657, 0.0
    %v712 = vmax.f32 %v662, 0.0
    %v713 = vmax.f32 %v665, 0.0
    %v714 = vmax.f32 %v670, 0.0
    %v715 = vmax.f32 %v673, 0.0
    %v716 = vmax.f32 %v678, 0.0
    %v717 = vmax.f32 %v681, 0.0
    %v718 = vmax.f32 %v686, 0.0
    %v719 = vmax.f32 %v689, 0.0
    %v720 = vmax.f32 %v694, 0.0
    %v721 = vmax.f32 %v697, 0.0
    %v722 = vmax.f32 %v702, 0.0
    %v723 = vmax.f32 %v705, 0.0
    %v724 = vadd.f32 %v708, %v501
    %v725 = vadd.f32 %v709, %v504
    %v726 = vadd.f32 %v710, %v509
    %v727 = vadd.f32 %v711, %v512
    %v728 = vadd.f32 %v712, %v517
    %v729 = vadd.f32 %v713, %v520
    %v730 = vadd.f32 %v714, %v525
    %v731 = vadd.f32 %v715, %v528
    %v732 = vadd.f32 %v716, %v533
    %v733 = vadd.f32 %v717, %v536
    %v734 = vadd.f32 %v718, %v541
    %v735 = vadd.f32 %v719, %v544
    %v736 = vadd.f32 %v720, %v549
    %v737 = vadd.f32 %v721, %v552
    %v738 = vadd.f32 %v722, %v557
    %v739 = vadd.f32 %v723, %v560
    %v740 = vpack.c.bf16 %v382, %v381
    %v741 = vpack.c.bf16 %v384, %v383
    %v742 = vpack.c.bf16 %v386, %v385
    %v743 = vpack.c.bf16 %v388, %v387
    %v744 = vpack.c.bf16 %v390, %v389
    %v745 = vpack.c.bf16 %v392, %v391
    %v746 = vpack.c.bf16 %v394, %v393
    %v747 = vpack.c.bf16 %v396, %v395
    %v748 = vlaneseq
    %v749 = vshrl.u32 %v748, 7
    %v750 = vsub.s32 0, %v749
    %v751 = vrot.slane %v414, %v750
    %v756 = vunpack.c.l.b16 %v401
    %v757 = vunpack.c.l.b16 %v402
    %v758 = vunpack.c.l.b16 %v403
    %v759 = vunpack.c.l.b16 %v404
    %v760 = vpack.c.b16 %v757, %v756
    %v761 = vpack.c.b16 %v759, %v758
    %v765 = vsel %vm441, %v740, 0
    %v768 = vsel %vm441, %v741, 0
    %v771 = vsel %vm441, %v742, 0
    %v774 = vsel %vm441, %v743, 0
    %v777 = vsel %vm441, %v744, 0
    %v780 = vsel %vm441, %v745, 0
    %v783 = vsel %vm441, %v746, 0
    %v786 = vsel %vm441, %v747, 0
    %788 = vmatprep.subr.bf16.mxu0 0
    %789 = vmatpush1.bf16.msra.mxu0 %v760
    %790 = vmatprep.subr.bf16.mxu0 0
    %791 = vmatpush1.bf16.msra.mxu0 %v761
    %792 = vmatprep.subr.bf16.mxu0 0
    %793 = vmatpush1.bf16.msra.mxu0 0
    %794 = vmatprep.subr.bf16.mxu0 0
    %795 = vmatpush1.bf16.msra.mxu0 0
    %796 = vmatprep.subr.bf16.mxu0 0
    %797 = vmatpush1.bf16.msra.mxu0 0
    %798 = vmatprep.subr.bf16.mxu0 0
    %799 = vmatpush1.bf16.msra.mxu0 0
    %800 = vmatprep.subr.bf16.mxu0 0
    %801 = vmatpush1.bf16.msra.mxu0 0
    %802 = vmatprep.subr.bf16.mxu0 0
    %803 = vmatpush1.bf16.msra.mxu0 0
    %804 = vmatprep.subr.bf16.mxu0 0
    %805 = vmatpush1.bf16.msra.mxu0 0
    %806 = vmatprep.subr.bf16.mxu0 0
    %807 = vmatpush1.bf16.msra.mxu0 0
    %808 = vmatprep.subr.bf16.mxu0 0
    %809 = vmatpush1.bf16.msra.mxu0 0
    %810 = vmatprep.subr.bf16.mxu0 0
    %811 = vmatpush1.bf16.msra.mxu0 0
    %812 = vmatprep.subr.bf16.mxu0 0
    %813 = vmatpush1.bf16.msra.mxu0 0
    %814 = vmatprep.subr.bf16.mxu0 0
    %815 = vmatpush1.bf16.msra.mxu0 0
    %816 = vmatprep.subr.bf16.mxu0 0
    %817 = vmatpush1.bf16.msra.mxu0 0
    %818 = vmatprep.subr.bf16.mxu0 0
    %819 = vmatpush1.bf16.msra.mxu0 0
    %820 = vmatprep.mubr.bf16.mxu0 0
    %821 = vmatmul.mubr.bf16.gmra.mrb[0].mxu0 %v765
    %v822 = vpop.f32.mrb[0].mxu0
    %v823 = vadd.f32 %v751, %v822
    %v824 = vpop.f32.mrb[0].mxu0
    %v825 = vpop.f32.mrb[0].mxu0
    %v826 = vadd.f32 %v751, %v825
    %v827 = vpop.f32.mrb[0].mxu0
    %828 = vmatprep.mubr.bf16.mxu0 0
    %829 = vmatmul.mubr.bf16.gmra.mrb[0].mxu0 %v768
    %v830 = vpop.f32.mrb[0].mxu0
    %v831 = vadd.f32 %v751, %v830
    %v832 = vpop.f32.mrb[0].mxu0
    %v833 = vpop.f32.mrb[0].mxu0
    %v834 = vadd.f32 %v751, %v833
    %v835 = vpop.f32.mrb[0].mxu0
    %836 = vmatprep.mubr.bf16.mxu0 0
    %837 = vmatmul.mubr.bf16.gmra.mrb[0].mxu0 %v771
    %v838 = vpop.f32.mrb[0].mxu0
    %v839 = vadd.f32 %v751, %v838
    %v840 = vpop.f32.mrb[0].mxu0
    %v841 = vpop.f32.mrb[0].mxu0
    %v842 = vadd.f32 %v751, %v841
    %v843 = vpop.f32.mrb[0].mxu0
    %844 = vmatprep.mubr.bf16.mxu0 0
    %845 = vmatmul.mubr.bf16.gmra.mrb[0].mxu0 %v774
    %v846 = vpop.f32.mrb[0].mxu0
    %v847 = vadd.f32 %v751, %v846
    %v848 = vpop.f32.mrb[0].mxu0
    %v849 = vpop.f32.mrb[0].mxu0
    %v850 = vadd.f32 %v751, %v849
    %v851 = vpop.f32.mrb[0].mxu0
    %852 = vmatprep.mubr.bf16.mxu0 0
    %853 = vmatmul.mubr.bf16.gmra.mrb[0].mxu0 %v777
    %v854 = vpop.f32.mrb[0].mxu0
    %v855 = vadd.f32 %v751, %v854
    %v856 = vpop.f32.mrb[0].mxu0
    %v857 = vpop.f32.mrb[0].mxu0
    %v858 = vadd.f32 %v751, %v857
    %v859 = vpop.f32.mrb[0].mxu0
    %860 = vmatprep.mubr.bf16.mxu0 0
    %861 = vmatmul.mubr.bf16.gmra.mrb[0].mxu0 %v780
    %v862 = vpop.f32.mrb[0].mxu0
    %v863 = vadd.f32 %v751, %v862
    %v864 = vpop.f32.mrb[0].mxu0
    %v865 = vpop.f32.mrb[0].mxu0
    %v866 = vadd.f32 %v751, %v865
    %v867 = vpop.f32.mrb[0].mxu0
    %868 = vmatprep.mubr.bf16.mxu0 0
    %869 = vmatmul.mubr.bf16.gmra.mrb[0].mxu0 %v783
    %v870 = vpop.f32.mrb[0].mxu0
    %v871 = vadd.f32 %v751, %v870
    %v872 = vpop.f32.mrb[0].mxu0
    %v873 = vpop.f32.mrb[0].mxu0
    %v874 = vadd.f32 %v751, %v873
    %v875 = vpop.f32.mrb[0].mxu0
    %876 = vmatprep.mubr.bf16.mxu0 0
    %877 = vmatmul.mubr.bf16.gmra.mrb[0].mxu0 %v786
    %v878 = vpop.f32.mrb[0].mxu0
    %v879 = vadd.f32 %v751, %v878
    %v880 = vpop.f32.mrb[0].mxu0
    %v881 = vpop.f32.mrb[0].mxu0
    %v882 = vadd.f32 %v751, %v881
    %v883 = vpop.f32.mrb[0].mxu0
    %884 = vdwg.mxu0
    %v885 = vpack.c.bf16 %v826, %v823
    %v886 = vpack.c.bf16 %v834, %v831
    %v887 = vpack.c.bf16 %v842, %v839
    %v888 = vpack.c.bf16 %v850, %v847
    %v889 = vpack.c.bf16 %v858, %v855
    %v890 = vpack.c.bf16 %v866, %v863
    %v891 = vpack.c.bf16 %v874, %v871
    %v892 = vpack.c.bf16 %v882, %v879
    %v893 = vlaneseq
    %v894 = vshrl.u32 %v893, 7
    %v895 = vsub.s32 0, %v894
    %v896 = vrot.slane %v416, %v895
    %v901 = vunpack.c.l.b16 %v409
    %v902 = vunpack.c.l.b16 %v410
    %v903 = vunpack.c.l.b16 %v411
    %v904 = vunpack.c.l.b16 %v412
    %v905 = vpack.c.b16 %v902, %v901
    %v906 = vpack.c.b16 %v904, %v903
    %v910 = vsel %vm441, %v885, 0
    %v913 = vsel %vm441, %v886, 0
    %v916 = vsel %vm441, %v887, 0
    %v919 = vsel %vm441, %v888, 0
    %v922 = vsel %vm441, %v889, 0
    %v925 = vsel %vm441, %v890, 0
    %v928 = vsel %vm441, %v891, 0
    %v931 = vsel %vm441, %v892, 0
    %933 = vmatprep.subr.bf16.mxu0 0
    %934 = vmatpush1.bf16.msra.mxu0 %v905
    %935 = vmatprep.subr.bf16.mxu0 0
    %936 = vmatpush1.bf16.msra.mxu0 %v906
    %937 = vmatprep.subr.bf16.mxu0 0
    %938 = vmatpush1.bf16.msra.mxu0 0
    %939 = vmatprep.subr.bf16.mxu0 0
    %940 = vmatpush1.bf16.msra.mxu0 0
    %941 = vmatprep.subr.bf16.mxu0 0
    %942 = vmatpush1.bf16.msra.mxu0 0
    %943 = vmatprep.subr.bf16.mxu0 0
    %944 = vmatpush1.bf16.msra.mxu0 0
    %945 = vmatprep.subr.bf16.mxu0 0
    %946 = vmatpush1.bf16.msra.mxu0 0
    %947 = vmatprep.subr.bf16.mxu0 0
    %948 = vmatpush1.bf16.msra.mxu0 0
    %949 = vmatprep.subr.bf16.mxu0 0
    %950 = vmatpush1.bf16.msra.mxu0 0
    %951 = vmatprep.subr.bf16.mxu0 0
    %952 = vmatpush1.bf16.msra.mxu0 0
    %953 = vmatprep.subr.bf16.mxu0 0
    %954 = vmatpush1.bf16.msra.mxu0 0
    %955 = vmatprep.subr.bf16.mxu0 0
    %956 = vmatpush1.bf16.msra.mxu0 0
    %957 = vmatprep.subr.bf16.mxu0 0
    %958 = vmatpush1.bf16.msra.mxu0 0
    %959 = vmatprep.subr.bf16.mxu0 0
    %960 = vmatpush1.bf16.msra.mxu0 0
    %961 = vmatprep.subr.bf16.mxu0 0
    %962 = vmatpush1.bf16.msra.mxu0 0
    %963 = vmatprep.subr.bf16.mxu0 0
    %964 = vmatpush1.bf16.msra.mxu0 0
    %965 = vmatprep.mubr.bf16.mxu0 0
    %966 = vmatmul.mubr.bf16.gmra.mrb[0].mxu0 %v910
    %v967 = vpop.f32.mrb[0].mxu0
    %v968 = vadd.f32 %v896, %v967
    %v969 = vpop.f32.mrb[0].mxu0
    %v970 = vpop.f32.mrb[0].mxu0
    %v971 = vadd.f32 %v896, %v970
    %v972 = vpop.f32.mrb[0].mxu0
    %973 = vmatprep.mubr.bf16.mxu0 0
    %974 = vmatmul.mubr.bf16.gmra.mrb[0].mxu0 %v913
    %v975 = vpop.f32.mrb[0].mxu0
    %v976 = vadd.f32 %v896, %v975
    %v977 = vpop.f32.mrb[0].mxu0
    %v978 = vpop.f32.mrb[0].mxu0
    %v979 = vadd.f32 %v896, %v978
    %v980 = vpop.f32.mrb[0].mxu0
    %981 = vmatprep.mubr.bf16.mxu0 0
    %982 = vmatmul.mubr.bf16.gmra.mrb[0].mxu0 %v916
    %v983 = vpop.f32.mrb[0].mxu0
    %v984 = vadd.f32 %v896, %v983
    %v985 = vpop.f32.mrb[0].mxu0
    %v986 = vpop.f32.mrb[0].mxu0
    %v987 = vadd.f32 %v896, %v986
    %v988 = vpop.f32.mrb[0].mxu0
    %989 = vmatprep.mubr.bf16.mxu0 0
    %990 = vmatmul.mubr.bf16.gmra.mrb[0].mxu0 %v919
    %v991 = vpop.f32.mrb[0].mxu0
    %v992 = vadd.f32 %v896, %v991
    %v993 = vpop.f32.mrb[0].mxu0
    %v994 = vpop.f32.mrb[0].mxu0
    %v995 = vadd.f32 %v896, %v994
    %v996 = vpop.f32.mrb[0].mxu0
    %997 = vmatprep.mubr.bf16.mxu0 0
    %998 = vmatmul.mubr.bf16.gmra.mrb[0].mxu0 %v922
    %v999 = vpop.f32.mrb[0].mxu0
    %v1000 = vadd.f32 %v896, %v999
    %v1001 = vpop.f32.mrb[0].mxu0
    %v1002 = vpop.f32.mrb[0].mxu0
    %v1003 = vadd.f32 %v896, %v1002
    %v1004 = vpop.f32.mrb[0].mxu0
    %1005 = vmatprep.mubr.bf16.mxu0 0
    %1006 = vmatmul.mubr.bf16.gmra.mrb[0].mxu0 %v925
    %v1007 = vpop.f32.mrb[0].mxu0
    %v1008 = vadd.f32 %v896, %v1007
    %v1009 = vpop.f32.mrb[0].mxu0
    %v1010 = vpop.f32.mrb[0].mxu0
    %v1011 = vadd.f32 %v896, %v1010
    %v1012 = vpop.f32.mrb[0].mxu0
    %1013 = vmatprep.mubr.bf16.mxu0 0
    %1014 = vmatmul.mubr.bf16.gmra.mrb[0].mxu0 %v928
    %v1015 = vpop.f32.mrb[0].mxu0
    %v1016 = vadd.f32 %v896, %v1015
    %v1017 = vpop.f32.mrb[0].mxu0
    %v1018 = vpop.f32.mrb[0].mxu0
    %v1019 = vadd.f32 %v896, %v1018
    %v1020 = vpop.f32.mrb[0].mxu0
    %1021 = vmatprep.mubr.bf16.mxu0 0
    %1022 = vmatmul.mubr.bf16.gmra.mrb[0].mxu0 %v931
    %v1023 = vpop.f32.mrb[0].mxu0
    %v1024 = vadd.f32 %v896, %v1023
    %v1025 = vpop.f32.mrb[0].mxu0
    %v1026 = vpop.f32.mrb[0].mxu0
    %v1027 = vadd.f32 %v896, %v1026
    %v1028 = vpop.f32.mrb[0].mxu0
    %1029 = vdwg.mxu0
    %v1030 = vmax.f32 %v968, 0.0
    %v1031 = vmax.f32 %v971, 0.0
    %v1032 = vmax.f32 %v976, 0.0
    %v1033 = vmax.f32 %v979, 0.0
    %v1034 = vmax.f32 %v984, 0.0
    %v1035 = vmax.f32 %v987, 0.0
    %v1036 = vmax.f32 %v992, 0.0
    %v1037 = vmax.f32 %v995, 0.0
    %v1038 = vmax.f32 %v1000, 0.0
    %v1039 = vmax.f32 %v1003, 0.0
    %v1040 = vmax.f32 %v1008, 0.0
    %v1041 = vmax.f32 %v1011, 0.0
    %v1042 = vmax.f32 %v1016, 0.0
    %v1043 = vmax.f32 %v1019, 0.0
    %v1044 = vmax.f32 %v1024, 0.0
    %v1045 = vmax.f32 %v1027, 0.0
    %v1046 = vadd.f32 %v1030, %v823
    %v1047 = vadd.f32 %v1031, %v826
    %v1048 = vadd.f32 %v1032, %v831
    %v1049 = vadd.f32 %v1033, %v834
    %v1050 = vadd.f32 %v1034, %v839
    %v1051 = vadd.f32 %v1035, %v842
    %v1052 = vadd.f32 %v1036, %v847
    %v1053 = vadd.f32 %v1037, %v850
    %v1054 = vadd.f32 %v1038, %v855
    %v1055 = vadd.f32 %v1039, %v858
    %v1056 = vadd.f32 %v1040, %v863
    %v1057 = vadd.f32 %v1041, %v866
    %v1058 = vadd.f32 %v1042, %v871
    %v1059 = vadd.f32 %v1043, %v874
    %v1060 = vadd.f32 %v1044, %v879
    %v1061 = vadd.f32 %v1045, %v882
    %1062 = vst.msk [vmem:[#allocation3] sm:$0xff] %vm441, %v724
    %1063 = vst.msk [vmem:[#allocation3 + $0x8] sm:$0xff] %vm441, %v725
    %1064 = vst.msk [vmem:[#allocation3 + $0x10] sm:$0xff] %vm441, %v726
    %1065 = vst.msk [vmem:[#allocation3 + $0x18] sm:$0xff] %vm441, %v727
    %1066 = vst.msk [vmem:[#allocation3 + $0x20] sm:$0xff] %vm441, %v728
    %1067 = vst.msk [vmem:[#allocation3 + $0x28] sm:$0xff] %vm441, %v729
    %1068 = vst.msk [vmem:[#allocation3 + $0x30] sm:$0xff] %vm441, %v730
    %1069 = vst.msk [vmem:[#allocation3 + $0x38] sm:$0xff] %vm441, %v731
    %1070 = vst.msk [vmem:[#allocation3 + $0x40] sm:$0xff] %vm441, %v732
    %1071 = vst.msk [vmem:[#allocation3 + $0x48] sm:$0xff] %vm441, %v733
    %1072 = vst.msk [vmem:[#allocation3 + $0x50] sm:$0xff] %vm441, %v734
    %1073 = vst.msk [vmem:[#allocation3 + $0x58] sm:$0xff] %vm441, %v735
    %1074 = vst.msk [vmem:[#allocation3 + $0x60] sm:$0xff] %vm441, %v736
    %1075 = vst.msk [vmem:[#allocation3 + $0x68] sm:$0xff] %vm441, %v737
    %1076 = vst.msk [vmem:[#allocation3 + $0x70] sm:$0xff] %vm441, %v738
    %1077 = vst.msk [vmem:[#allocation3 + $0x78] sm:$0xff] %vm441, %v739
    %1078 = vst.msk [vmem:[#allocation5] sm:$0xff] %vm441, %v1046
    %1079 = vst.msk [vmem:[#allocation5 + $0x8] sm:$0xff] %vm441, %v1047
    %1080 = vst.msk [vmem:[#allocation5 + $0x10] sm:$0xff] %vm441, %v1048
    %1081 = vst.msk [vmem:[#allocation5 + $0x18] sm:$0xff] %vm441, %v1049
    %1082 = vst.msk [vmem:[#allocation5 + $0x20] sm:$0xff] %vm441, %v1050
    %1083 = vst.msk [vmem:[#allocation5 + $0x28] sm:$0xff] %vm441, %v1051
    %1084 = vst.msk [vmem:[#allocation5 + $0x30] sm:$0xff] %vm441, %v1052
    %1085 = vst.msk [vmem:[#allocation5 + $0x38] sm:$0xff] %vm441, %v1053
    %1086 = vst.msk [vmem:[#allocation5 + $0x40] sm:$0xff] %vm441, %v1054
    %1087 = vst.msk [vmem:[#allocation5 + $0x48] sm:$0xff] %vm441, %v1055
    %1088 = vst.msk [vmem:[#allocation5 + $0x50] sm:$0xff] %vm441, %v1056
    %1089 = vst.msk [vmem:[#allocation5 + $0x58] sm:$0xff] %vm441, %v1057
    %1090 = vst.msk [vmem:[#allocation5 + $0x60] sm:$0xff] %vm441, %v1058
    %1091 = vst.msk [vmem:[#allocation5 + $0x68] sm:$0xff] %vm441, %v1059
    %1092 = vst.msk [vmem:[#allocation5 + $0x70] sm:$0xff] %vm441, %v1060
    %1093 = vst.msk [vmem:[#allocation5 + $0x78] sm:$0xff] %vm441, %v1061
    %v1094 = vsel %vm441, %v724, 0.0
    %v1095 = vrot.slane %v1094, 4
    %v1096 = vadd.f32 %v1094, %v1095
    %v1097 = vrot.slane %v1096, 2
    %v1098 = vadd.f32 %v1096, %v1097
    %v1099 = vrot.slane %v1098, 1
    %v1100 = vadd.f32 %v1098, %v1099
    %v1101 = vsel %vm441, %v725, 0.0
    %v1102 = vrot.slane %v1101, 4
    %v1103 = vadd.f32 %v1101, %v1102
    %v1104 = vrot.slane %v1103, 2
    %v1105 = vadd.f32 %v1103, %v1104
    %v1106 = vrot.slane %v1105, 1
    %v1107 = vadd.f32 %v1105, %v1106
    %v1108 = vsel %vm441, %v726, 0.0
    %v1109 = vrot.slane %v1108, 4
    %v1110 = vadd.f32 %v1108, %v1109
    %v1111 = vrot.slane %v1110, 2
    %v1112 = vadd.f32 %v1110, %v1111
    %v1113 = vrot.slane %v1112, 1
    %v1114 = vadd.f32 %v1112, %v1113
    %v1115 = vsel %vm441, %v727, 0.0
    %v1116 = vrot.slane %v1115, 4
    %v1117 = vadd.f32 %v1115, %v1116
    %v1118 = vrot.slane %v1117, 2
    %v1119 = vadd.f32 %v1117, %v1118
    %v1120 = vrot.slane %v1119, 1
    %v1121 = vadd.f32 %v1119, %v1120
    %v1122 = vsel %vm441, %v728, 0.0
    %v1123 = vrot.slane %v1122, 4
    %v1124 = vadd.f32 %v1122, %v1123
    %v1125 = vrot.slane %v1124, 2
    %v1126 = vadd.f32 %v1124, %v1125
    %v1127 = vrot.slane %v1126, 1
    %v1128 = vadd.f32 %v1126, %v1127
    %v1129 = vsel %vm441, %v729, 0.0
    %v1130 = vrot.slane %v1129, 4
    %v1131 = vadd.f32 %v1129, %v1130
    %v1132 = vrot.slane %v1131, 2
    %v1133 = vadd.f32 %v1131, %v1132
    %v1134 = vrot.slane %v1133, 1
    %v1135 = vadd.f32 %v1133, %v1134
    %v1136 = vsel %vm441, %v730, 0.0
    %v1137 = vrot.slane %v1136, 4
    %v1138 = vadd.f32 %v1136, %v1137
    %v1139 = vrot.slane %v1138, 2
    %v1140 = vadd.f32 %v1138, %v1139
    %v1141 = vrot.slane %v1140, 1
    %v1142 = vadd.f32 %v1140, %v1141
    %v1143 = vsel %vm441, %v731, 0.0
    %v1144 = vrot.slane %v1143, 4
    %v1145 = vadd.f32 %v1143, %v1144
    %v1146 = vrot.slane %v1145, 2
    %v1147 = vadd.f32 %v1145, %v1146
    %v1148 = vrot.slane %v1147, 1
    %v1149 = vadd.f32 %v1147, %v1148
    %v1150 = vsel %vm441, %v732, 0.0
    %v1151 = vrot.slane %v1150, 4
    %v1152 = vadd.f32 %v1150, %v1151
    %v1153 = vrot.slane %v1152, 2
    %v1154 = vadd.f32 %v1152, %v1153
    %v1155 = vrot.slane %v1154, 1
    %v1156 = vadd.f32 %v1154, %v1155
    %v1157 = vsel %vm441, %v733, 0.0
    %v1158 = vrot.slane %v1157, 4
    %v1159 = vadd.f32 %v1157, %v1158
    %v1160 = vrot.slane %v1159, 2
    %v1161 = vadd.f32 %v1159, %v1160
    %v1162 = vrot.slane %v1161, 1
    %v1163 = vadd.f32 %v1161, %v1162
    %v1164 = vsel %vm441, %v734, 0.0
    %v1165 = vrot.slane %v1164, 4
    %v1166 = vadd.f32 %v1164, %v1165
    %v1167 = vrot.slane %v1166, 2
    %v1168 = vadd.f32 %v1166, %v1167
    %v1169 = vrot.slane %v1168, 1
    %v1170 = vadd.f32 %v1168, %v1169
    %v1171 = vsel %vm441, %v735, 0.0
    %v1172 = vrot.slane %v1171, 4
    %v1173 = vadd.f32 %v1171, %v1172
    %v1174 = vrot.slane %v1173, 2
    %v1175 = vadd.f32 %v1173, %v1174
    %v1176 = vrot.slane %v1175, 1
    %v1177 = vadd.f32 %v1175, %v1176
    %v1178 = vsel %vm441, %v736, 0.0
    %v1179 = vrot.slane %v1178, 4
    %v1180 = vadd.f32 %v1178, %v1179
    %v1181 = vrot.slane %v1180, 2
    %v1182 = vadd.f32 %v1180, %v1181
    %v1183 = vrot.slane %v1182, 1
    %v1184 = vadd.f32 %v1182, %v1183
    %v1185 = vsel %vm441, %v737, 0.0
    %v1186 = vrot.slane %v1185, 4
    %v1187 = vadd.f32 %v1185, %v1186
    %v1188 = vrot.slane %v1187, 2
    %v1189 = vadd.f32 %v1187, %v1188
    %v1190 = vrot.slane %v1189, 1
    %v1191 = vadd.f32 %v1189, %v1190
    %v1192 = vsel %vm441, %v738, 0.0
    %v1193 = vrot.slane %v1192, 4
    %v1194 = vadd.f32 %v1192, %v1193
    %v1195 = vrot.slane %v1194, 2
    %v1196 = vadd.f32 %v1194, %v1195
    %v1197 = vrot.slane %v1196, 1
    %v1198 = vadd.f32 %v1196, %v1197
    %v1199 = vsel %vm441, %v739, 0.0
    %v1200 = vrot.slane %v1199, 4
    %v1201 = vadd.f32 %v1199, %v1200
    %v1202 = vrot.slane %v1201, 2
    %v1203 = vadd.f32 %v1201, %v1202
    %v1204 = vrot.slane %v1203, 1
    %v1205 = vadd.f32 %v1203, %v1204
    %vm1222 = vcmask 1041409
    %v1223 = vsel %vm1222, %v1107, %v1100
    %vm1224 = vcmask 1042434
    %v1225 = vsel %vm1224, %v1114, %v1223
    %vm1226 = vcmask 1043459
    %v1227 = vsel %vm1226, %v1121, %v1225
    %vm1228 = vcmask 1044484
    %v1229 = vsel %vm1228, %v1128, %v1227
    %vm1230 = vcmask 1045509
    %v1231 = vsel %vm1230, %v1135, %v1229
    %vm1232 = vcmask 1046534
    %v1233 = vsel %vm1232, %v1142, %v1231
    %vm1234 = vcmask 1047559
    %v1235 = vsel %vm1234, %v1149, %v1233
    %v1236 = vsel %vm1222, %v1163, %v1156
    %v1237 = vsel %vm1224, %v1170, %v1236
    %v1238 = vsel %vm1226, %v1177, %v1237
    %v1239 = vsel %vm1228, %v1184, %v1238
    %v1240 = vsel %vm1230, %v1191, %v1239
    %v1241 = vsel %vm1232, %v1198, %v1240
    %v1242 = vsel %vm1234, %v1205, %v1241
    %1245 = vst.msk [vmem:[#allocation2] sm:$0xff] %vm441, %v1235
    %1246 = vst.msk [vmem:[#allocation2 + $0x8] sm:$0xff] %vm441, %v1242
    %v1247 = vsel %vm441, %v1046, 0.0
    %v1248 = vrot.slane %v1247, 4
    %v1249 = vadd.f32 %v1247, %v1248
    %v1250 = vrot.slane %v1249, 2
    %v1251 = vadd.f32 %v1249, %v1250
    %v1252 = vrot.slane %v1251, 1
    %v1253 = vadd.f32 %v1251, %v1252
    %v1254 = vsel %vm441, %v1047, 0.0
    %v1255 = vrot.slane %v1254, 4
    %v1256 = vadd.f32 %v1254, %v1255
    %v1257 = vrot.slane %v1256, 2
    %v1258 = vadd.f32 %v1256, %v1257
    %v1259 = vrot.slane %v1258, 1
    %v1260 = vadd.f32 %v1258, %v1259
    %v1261 = vsel %vm441, %v1048, 0.0
    %v1262 = vrot.slane %v1261, 4
    %v1263 = vadd.f32 %v1261, %v1262
    %v1264 = vrot.slane %v1263, 2
    %v1265 = vadd.f32 %v1263, %v1264
    %v1266 = vrot.slane %v1265, 1
    %v1267 = vadd.f32 %v1265, %v1266
    %v1268 = vsel %vm441, %v1049, 0.0
    %v1269 = vrot.slane %v1268, 4
    %v1270 = vadd.f32 %v1268, %v1269
    %v1271 = vrot.slane %v1270, 2
    %v1272 = vadd.f32 %v1270, %v1271
    %v1273 = vrot.slane %v1272, 1
    %v1274 = vadd.f32 %v1272, %v1273
    %v1275 = vsel %vm441, %v1050, 0.0
    %v1276 = vrot.slane %v1275, 4
    %v1277 = vadd.f32 %v1275, %v1276
    %v1278 = vrot.slane %v1277, 2
    %v1279 = vadd.f32 %v1277, %v1278
    %v1280 = vrot.slane %v1279, 1
    %v1281 = vadd.f32 %v1279, %v1280
    %v1282 = vsel %vm441, %v1051, 0.0
    %v1283 = vrot.slane %v1282, 4
    %v1284 = vadd.f32 %v1282, %v1283
    %v1285 = vrot.slane %v1284, 2
    %v1286 = vadd.f32 %v1284, %v1285
    %v1287 = vrot.slane %v1286, 1
    %v1288 = vadd.f32 %v1286, %v1287
    %v1289 = vsel %vm441, %v1052, 0.0
    %v1290 = vrot.slane %v1289, 4
    %v1291 = vadd.f32 %v1289, %v1290
    %v1292 = vrot.slane %v1291, 2
    %v1293 = vadd.f32 %v1291, %v1292
    %v1294 = vrot.slane %v1293, 1
    %v1295 = vadd.f32 %v1293, %v1294
    %v1296 = vsel %vm441, %v1053, 0.0
    %v1297 = vrot.slane %v1296, 4
    %v1298 = vadd.f32 %v1296, %v1297
    %v1299 = vrot.slane %v1298, 2
    %v1300 = vadd.f32 %v1298, %v1299
    %v1301 = vrot.slane %v1300, 1
    %v1302 = vadd.f32 %v1300, %v1301
    %v1303 = vsel %vm441, %v1054, 0.0
    %v1304 = vrot.slane %v1303, 4
    %v1305 = vadd.f32 %v1303, %v1304
    %v1306 = vrot.slane %v1305, 2
    %v1307 = vadd.f32 %v1305, %v1306
    %v1308 = vrot.slane %v1307, 1
    %v1309 = vadd.f32 %v1307, %v1308
    %v1310 = vsel %vm441, %v1055, 0.0
    %v1311 = vrot.slane %v1310, 4
    %v1312 = vadd.f32 %v1310, %v1311
    %v1313 = vrot.slane %v1312, 2
    %v1314 = vadd.f32 %v1312, %v1313
    %v1315 = vrot.slane %v1314, 1
    %v1316 = vadd.f32 %v1314, %v1315
    %v1317 = vsel %vm441, %v1056, 0.0
    %v1318 = vrot.slane %v1317, 4
    %v1319 = vadd.f32 %v1317, %v1318
    %v1320 = vrot.slane %v1319, 2
    %v1321 = vadd.f32 %v1319, %v1320
    %v1322 = vrot.slane %v1321, 1
    %v1323 = vadd.f32 %v1321, %v1322
    %v1324 = vsel %vm441, %v1057, 0.0
    %v1325 = vrot.slane %v1324, 4
    %v1326 = vadd.f32 %v1324, %v1325
    %v1327 = vrot.slane %v1326, 2
    %v1328 = vadd.f32 %v1326, %v1327
    %v1329 = vrot.slane %v1328, 1
    %v1330 = vadd.f32 %v1328, %v1329
    %v1331 = vsel %vm441, %v1058, 0.0
    %v1332 = vrot.slane %v1331, 4
    %v1333 = vadd.f32 %v1331, %v1332
    %v1334 = vrot.slane %v1333, 2
    %v1335 = vadd.f32 %v1333, %v1334
    %v1336 = vrot.slane %v1335, 1
    %v1337 = vadd.f32 %v1335, %v1336
    %v1338 = vsel %vm441, %v1059, 0.0
    %v1339 = vrot.slane %v1338, 4
    %v1340 = vadd.f32 %v1338, %v1339
    %v1341 = vrot.slane %v1340, 2
    %v1342 = vadd.f32 %v1340, %v1341
    %v1343 = vrot.slane %v1342, 1
    %v1344 = vadd.f32 %v1342, %v1343
    %v1345 = vsel %vm441, %v1060, 0.0
    %v1346 = vrot.slane %v1345, 4
    %v1347 = vadd.f32 %v1345, %v1346
    %v1348 = vrot.slane %v1347, 2
    %v1349 = vadd.f32 %v1347, %v1348
    %v1350 = vrot.slane %v1349, 1
    %v1351 = vadd.f32 %v1349, %v1350
    %v1352 = vsel %vm441, %v1061, 0.0
    %v1353 = vrot.slane %v1352, 4
    %v1354 = vadd.f32 %v1352, %v1353
    %v1355 = vrot.slane %v1354, 2
    %v1356 = vadd.f32 %v1354, %v1355
    %v1357 = vrot.slane %v1356, 1
    %v1358 = vadd.f32 %v1356, %v1357
    %v1375 = vsel %vm1222, %v1260, %v1253
    %v1376 = vsel %vm1224, %v1267, %v1375
    %v1377 = vsel %vm1226, %v1274, %v1376
    %v1378 = vsel %vm1228, %v1281, %v1377
    %v1379 = vsel %vm1230, %v1288, %v1378
    %v1380 = vsel %vm1232, %v1295, %v1379
    %v1381 = vsel %vm1234, %v1302, %v1380
    %v1382 = vsel %vm1222, %v1316, %v1309
    %v1383 = vsel %vm1224, %v1323, %v1382
    %v1384 = vsel %vm1226, %v1330, %v1383
    %v1385 = vsel %vm1228, %v1337, %v1384
    %v1386 = vsel %vm1230, %v1344, %v1385
    %v1387 = vsel %vm1232, %v1351, %v1386
    %v1388 = vsel %vm1234, %v1358, %v1387
    %1389 = vrot.lane.b32.xlu0 %v1381, 32
    %v1390 = vpop.permute.xlu0 %1389
    %1391 = vrot.lane.b32.xlu0 %v1388, 32
    %v1392 = vpop.permute.xlu0 %1391
    %vm1395 = vcmask 523520
    %1396 = vst.msk [vmem:[#allocation2] sm:$0xff] %vm1395, %v1390
    %1397 = vst.msk [vmem:[#allocation2 + $0x8] sm:$0xff] %vm1395, %v1392
    %v1398 = vld [vmem:[#allocation2] sm:$0xff]
    %v1399 = vld [vmem:[#allocation2 + $0x8] sm:$0xff]
    %v1400 = vld [vmem:[%s4] sm:$0xf]
    %v1401 = vld [vmem:[%s4 + $0x4] sm:$0xf]
    %v1402 = vld [vmem:[%s4 + $0x8] sm:$0xf]
    %v1403 = vld [vmem:[%s4 + $0xc] sm:$0xf]
    %v1404 = vld [vmem:[%s4 + $0x10] sm:$0xf]
    %v1405 = vld [vmem:[%s4 + $0x14] sm:$0xf]
    %v1406 = vld [vmem:[%s4 + $0x18] sm:$0xf]
    %v1407 = vld [vmem:[%s4 + $0x1c] sm:$0xf]
    %v1408 = vld [vmem:[%s4 + $0x20] sm:$0xf]
    %v1409 = vld [vmem:[%s4 + $0x24] sm:$0xf]
    %v1410 = vld [vmem:[%s4 + $0x28] sm:$0xf]
    %v1411 = vld [vmem:[%s4 + $0x2c] sm:$0xf]
    %v1412 = vld [vmem:[%s4 + $0x30] sm:$0xf]
    %v1413 = vld [vmem:[%s4 + $0x34] sm:$0xf]
    %v1414 = vld [vmem:[%s4 + $0x38] sm:$0xf]
    %v1415 = vld [vmem:[%s4 + $0x3c] sm:$0xf]
    %v1416 = vld [vmem:[%s6 + $0x4] sm:$0x1]
    %v1417 = vld [vmem:[%s6 + $0x5] sm:$0x1]
    %v1418 = vld [vmem:[%s6 + $0x6] sm:$0x1]
    %v1419 = vpack.c.bf16 %v1399, %v1398
    %v1420 = vlaneseq
    %v1421 = vshrl.u32 %v1420, 7
    %v1422 = vsub.s32 0, %v1421
    %v1423 = vrot.slane %v1416, %v1422
    %v1432 = vunpack.c.l.b16 %v1400
    %v1433 = vunpack.c.l.b16 %v1401
    %v1434 = vunpack.c.l.b16 %v1402
    %v1435 = vunpack.c.l.b16 %v1403
    %v1436 = vunpack.c.l.b16 %v1404
    %v1437 = vunpack.c.l.b16 %v1405
    %v1438 = vunpack.c.l.b16 %v1406
    %v1439 = vunpack.c.l.b16 %v1407
    %v1440 = vpack.c.b16 %v1433, %v1432
    %v1441 = vpack.c.b16 %v1435, %v1434
    %v1442 = vpack.c.b16 %v1437, %v1436
    %v1443 = vpack.c.b16 %v1439, %v1438
    %vm1448 = vcmask 523264
    %v1450 = vsel %vm1448, %v1419, 0
    %1452 = vmatprep.subr.bf16.mxu0 0
    %1453 = vmatpush1.bf16.msra.mxu0 %v1440
    %1454 = vmatprep.subr.bf16.mxu0 0
    %1455 = vmatpush1.bf16.msra.mxu0 %v1441
    %1456 = vmatprep.subr.bf16.mxu0 0
    %1457 = vmatpush1.bf16.msra.mxu0 %v1442
    %1458 = vmatprep.subr.bf16.mxu0 0
    %1459 = vmatpush1.bf16.msra.mxu0 %v1443
    %1460 = vmatprep.subr.bf16.mxu0 0
    %1461 = vmatpush1.bf16.msra.mxu0 0
    %1462 = vmatprep.subr.bf16.mxu0 0
    %1463 = vmatpush1.bf16.msra.mxu0 0
    %1464 = vmatprep.subr.bf16.mxu0 0
    %1465 = vmatpush1.bf16.msra.mxu0 0
    %1466 = vmatprep.subr.bf16.mxu0 0
    %1467 = vmatpush1.bf16.msra.mxu0 0
    %1468 = vmatprep.subr.bf16.mxu0 0
    %1469 = vmatpush1.bf16.msra.mxu0 0
    %1470 = vmatprep.subr.bf16.mxu0 0
    %1471 = vmatpush1.bf16.msra.mxu0 0
    %1472 = vmatprep.subr.bf16.mxu0 0
    %1473 = vmatpush1.bf16.msra.mxu0 0
    %1474 = vmatprep.subr.bf16.mxu0 0
    %1475 = vmatpush1.bf16.msra.mxu0 0
    %1476 = vmatprep.subr.bf16.mxu0 0
    %1477 = vmatpush1.bf16.msra.mxu0 0
    %1478 = vmatprep.subr.bf16.mxu0 0
    %1479 = vmatpush1.bf16.msra.mxu0 0
    %1480 = vmatprep.subr.bf16.mxu0 0
    %1481 = vmatpush1.bf16.msra.mxu0 0
    %1482 = vmatprep.subr.bf16.mxu0 0
    %1483 = vmatpush1.bf16.msra.mxu0 0
    %1484 = vmatprep.mubr.bf16.mxu0 0
    %1485 = vmatmul.mubr.bf16.gmra.mrb[0].mxu0 %v1450
    %v1486 = vpop.f32.mrb[0].mxu0
    %v1487 = vadd.f32 %v1423, %v1486
    %v1488 = vpop.f32.mrb[0].mxu0
    %v1489 = vpop.f32.mrb[0].mxu0
    %v1490 = vadd.f32 %v1423, %v1489
    %v1491 = vpop.f32.mrb[0].mxu0
    %1492 = vdwg.mxu0
    %v1493 = vmax.f32 %v1487, 0.0
    %v1494 = vmax.f32 %v1490, 0.0
    %v1495 = vpack.c.bf16 %v1494, %v1493
    %v1496 = vlaneseq
    %v1497 = vshrl.u32 %v1496, 7
    %v1498 = vsub.s32 0, %v1497
    %v1499 = vrot.slane %v1417, %v1498
    %v1508 = vunpack.c.l.b16 %v1408
    %v1509 = vunpack.c.l.b16 %v1409
    %v1510 = vunpack.c.l.b16 %v1410
    %v1511 = vunpack.c.l.b16 %v1411
    %v1512 = vunpack.c.l.b16 %v1412
    %v1513 = vunpack.c.l.b16 %v1413
    %v1514 = vunpack.c.l.b16 %v1414
    %v1515 = vunpack.c.l.b16 %v1415
    %v1516 = vpack.c.b16 %v1509, %v1508
    %v1517 = vpack.c.b16 %v1511, %v1510
    %v1518 = vpack.c.b16 %v1513, %v1512
    %v1519 = vpack.c.b16 %v1515, %v1514
    %v1525 = vsel %vm1448, %v1495, 0
    %1527 = vmatprep.subr.bf16.mxu0 0
    %1528 = vmatpush1.bf16.msra.mxu0 %v1516
    %1529 = vmatprep.subr.bf16.mxu0 0
    %1530 = vmatpush1.bf16.msra.mxu0 %v1517
    %1531 = vmatprep.subr.bf16.mxu0 0
    %1532 = vmatpush1.bf16.msra.mxu0 %v1518
    %1533 = vmatprep.subr.bf16.mxu0 0
    %1534 = vmatpush1.bf16.msra.mxu0 %v1519
    %1535 = vmatprep.subr.bf16.mxu0 0
    %1536 = vmatpush1.bf16.msra.mxu0 0
    %1537 = vmatprep.subr.bf16.mxu0 0
    %1538 = vmatpush1.bf16.msra.mxu0 0
    %1539 = vmatprep.subr.bf16.mxu0 0
    %1540 = vmatpush1.bf16.msra.mxu0 0
    %1541 = vmatprep.subr.bf16.mxu0 0
    %1542 = vmatpush1.bf16.msra.mxu0 0
    %1543 = vmatprep.subr.bf16.mxu0 0
    %1544 = vmatpush1.bf16.msra.mxu0 0
    %1545 = vmatprep.subr.bf16.mxu0 0
    %1546 = vmatpush1.bf16.msra.mxu0 0
    %1547 = vmatprep.subr.bf16.mxu0 0
    %1548 = vmatpush1.bf16.msra.mxu0 0
    %1549 = vmatprep.subr.bf16.mxu0 0
    %1550 = vmatpush1.bf16.msra.mxu0 0
    %1551 = vmatprep.subr.bf16.mxu0 0
    %1552 = vmatpush1.bf16.msra.mxu0 0
    %1553 = vmatprep.subr.bf16.mxu0 0
    %1554 = vmatpush1.bf16.msra.mxu0 0
    %1555 = vmatprep.subr.bf16.mxu0 0
    %1556 = vmatpush1.bf16.msra.mxu0 0
    %1557 = vmatprep.subr.bf16.mxu0 0
    %1558 = vmatpush1.bf16.msra.mxu0 0
    %1559 = vmatprep.mubr.bf16.mxu0 0
    %1560 = vmatmul.mubr.bf16.gmra.mrb[0].mxu0 %v1525
    %v1561 = vpop.f32.mrb[0].mxu0
    %v1562 = vadd.f32 %v1499, %v1561
    %v1563 = vpop.f32.mrb[0].mxu0
    %v1564 = vpop.f32.mrb[0].mxu0
    %v1565 = vadd.f32 %v1499, %v1564
    %v1566 = vpop.f32.mrb[0].mxu0
    %1567 = vdwg.mxu0
    %v1568 = vld [vmem:[%s5] sm:$0xf]
    %v1569 = vld [vmem:[%s5 + $0x4] sm:$0xf]
    %v1570 = vld [vmem:[%s5 + $0x8] sm:$0xf]
    %v1571 = vld [vmem:[%s5 + $0xc] sm:$0xf]
    %v1572 = vld [vmem:[%s5 + $0x10] sm:$0xf]
    %v1573 = vld [vmem:[%s5 + $0x14] sm:$0xf]
    %v1574 = vld [vmem:[%s5 + $0x18] sm:$0xf]
    %v1575 = vld [vmem:[%s5 + $0x1c] sm:$0xf]
    %v1576 = vpack.c.bf16 %v1565, %v1562
    %v1577 = vlaneseq
    %v1578 = vshrl.u32 %v1577, 7
    %v1579 = vsub.s32 0, %v1578
    %v1580 = vrot.slane %v1418, %v1579
    %v1589 = vunpack.c.l.b16 %v1568
    %v1590 = vunpack.c.l.b16 %v1569
    %v1591 = vunpack.c.l.b16 %v1570
    %v1592 = vunpack.c.l.b16 %v1571
    %v1593 = vunpack.c.l.b16 %v1572
    %v1594 = vunpack.c.l.b16 %v1573
    %v1595 = vunpack.c.l.b16 %v1574
    %v1596 = vunpack.c.l.b16 %v1575
    %v1597 = vpack.c.b16 %v1590, %v1589
    %v1598 = vpack.c.b16 %v1592, %v1591
    %v1599 = vpack.c.b16 %v1594, %v1593
    %v1600 = vpack.c.b16 %v1596, %v1595
    %v1606 = vsel %vm1448, %v1576, 0
    %1608 = vmatprep.subr.bf16.mxu0 0
    %1609 = vmatpush1.bf16.msra.mxu0 %v1597
    %1610 = vmatprep.subr.bf16.mxu0 0
    %1611 = vmatpush1.bf16.msra.mxu0 %v1598
    %1612 = vmatprep.subr.bf16.mxu0 0
    %1613 = vmatpush1.bf16.msra.mxu0 %v1599
    %1614 = vmatprep.subr.bf16.mxu0 0
    %1615 = vmatpush1.bf16.msra.mxu0 %v1600
    %1616 = vmatprep.subr.bf16.mxu0 0
    %1617 = vmatpush1.bf16.msra.mxu0 0
    %1618 = vmatprep.subr.bf16.mxu0 0
    %1619 = vmatpush1.bf16.msra.mxu0 0
    %1620 = vmatprep.subr.bf16.mxu0 0
    %1621 = vmatpush1.bf16.msra.mxu0 0
    %1622 = vmatprep.subr.bf16.mxu0 0
    %1623 = vmatpush1.bf16.msra.mxu0 0
    %1624 = vmatprep.subr.bf16.mxu0 0
    %1625 = vmatpush1.bf16.msra.mxu0 0
    %1626 = vmatprep.subr.bf16.mxu0 0
    %1627 = vmatpush1.bf16.msra.mxu0 0
    %1628 = vmatprep.subr.bf16.mxu0 0
    %1629 = vmatpush1.bf16.msra.mxu0 0
    %1630 = vmatprep.subr.bf16.mxu0 0
    %1631 = vmatpush1.bf16.msra.mxu0 0
    %1632 = vmatprep.subr.bf16.mxu0 0
    %1633 = vmatpush1.bf16.msra.mxu0 0
    %1634 = vmatprep.subr.bf16.mxu0 0
    %1635 = vmatpush1.bf16.msra.mxu0 0
    %1636 = vmatprep.subr.bf16.mxu0 0
    %1637 = vmatpush1.bf16.msra.mxu0 0
    %1638 = vmatprep.subr.bf16.mxu0 0
    %1639 = vmatpush1.bf16.msra.mxu0 0
    %1640 = vmatprep.mubr.bf16.mxu0 0
    %1641 = vmatmul.mubr.bf16.gmra.mrb[0].mxu0 %v1606
    %v1642 = vpop.f32.mrb[0].mxu0
    %v1643 = vadd.f32 %v1580, %v1642
    %v1644 = vpop.f32.mrb[0].mxu0
    %v1645 = vpop.f32.mrb[0].mxu0
    %v1646 = vadd.f32 %v1580, %v1645
    %v1647 = vpop.f32.mrb[0].mxu0
    %1648 = vdwg.mxu0
    %v1649 = vld [vmem:[%s1] sm:$0xff]
    %v1650 = vld [vmem:[%s1 + $0x8] sm:$0xff]
    %v1651 = vmul.f32 %v1649, %v1649
    %v1652 = vmul.f32 %v1650, %v1650
    %1655 = vrot.lane.b32.xlu0 %v1651, 127
    %v1656 = vpop.permute.xlu0 %1655
    %1657 = vrot.lane.b32.xlu0 %v1652, 127
    %v1658 = vpop.permute.xlu0 %1657
    %v1661 = vadd.f32 %v1651, %v1656
    %v1662 = vadd.f32 %v1652, %v1658
    %v1663 = vmax.f32 %v1661, 1e-12
    %v1664 = vmax.f32 %v1662, 1e-12
    %v1665 = vrsqrt.pop %v1663
    %v1666 = vrsqrt.pop %v1664
    %v1667 = vmul.f32 %v1649, %v1665
    %v1668 = vmul.f32 %v1650, %v1666
    %1671 = vrot.lane.b32.xlu0 %v1665, 1
    %v1672 = vpop.permute.xlu0 %1671
    %1673 = vrot.lane.b32.xlu0 %v1666, 1
    %v1674 = vpop.permute.xlu0 %1673
    %v1677 = vmul.f32 %v1649, %v1672
    %v1678 = vmul.f32 %v1650, %v1674
    %1681 = vrot.lane.b32.xlu0 %v1643, 126
    %v1682 = vpop.permute.xlu0 %1681
    %1683 = vrot.lane.b32.xlu0 %v1646, 126
    %v1684 = vpop.permute.xlu0 %1683
    %v1687 = vadd.f32 %v1643, %v1682
    %v1688 = vadd.f32 %v1646, %v1684
    %1691 = vrot.lane.b32.xlu0 %v1667, 126
    %v1692 = vpop.permute.xlu0 %1691
    %1693 = vrot.lane.b32.xlu0 %v1668, 126
    %v1694 = vpop.permute.xlu0 %1693
    %v1697 = vmul.f32 %v1687, %v1692
    %v1698 = vmul.f32 %v1688, %v1694
    %1701 = vrot.lane.b32.xlu0 %v1677, 126
    %v1702 = vpop.permute.xlu0 %1701
    %1703 = vrot.lane.b32.xlu0 %v1678, 126
    %v1704 = vpop.permute.xlu0 %1703
    %v1707 = vmul.f32 %v1687, %v1702
    %v1708 = vmul.f32 %v1688, %v1704
    %1711 = vrot.lane.b32.xlu0 %v1707, 127
    %v1712 = vpop.permute.xlu0 %1711
    %1713 = vrot.lane.b32.xlu0 %v1708, 127
    %v1714 = vpop.permute.xlu0 %1713
    %v1717 = vsub.f32 %v1697, %v1712
    %v1718 = vsub.f32 %v1698, %v1714
    %1719 = vrot.lane.b32.xlu0 %v1677, 125
    %v1720 = vpop.permute.xlu0 %1719
    %1721 = vrot.lane.b32.xlu0 %v1678, 125
    %v1722 = vpop.permute.xlu0 %1721
    %v1725 = vmul.f32 %v1687, %v1720
    %v1726 = vmul.f32 %v1688, %v1722
    %1727 = vrot.lane.b32.xlu0 %v1667, 127
    %v1728 = vpop.permute.xlu0 %1727
    %1729 = vrot.lane.b32.xlu0 %v1668, 127
    %v1730 = vpop.permute.xlu0 %1729
    %v1733 = vmul.f32 %v1687, %v1728
    %v1734 = vmul.f32 %v1688, %v1730
    %1737 = vrot.lane.b32.xlu0 %v1733, 127
    %v1738 = vpop.permute.xlu0 %1737
    %1739 = vrot.lane.b32.xlu0 %v1734, 127
    %v1740 = vpop.permute.xlu0 %1739
    %v1743 = vadd.f32 %v1725, %v1738
    %v1744 = vadd.f32 %v1726, %v1740
    %v1745 = vlaneseq
    %v1746 = vand.u32 %v1745, 127
    %vm1747 = vcmp.eq.s32.totalorder %v1746, 0
    %1749 = vset.pattern.permute.xlu0 0
    %1750 = vperm.xlu0 %1749, %v1717
    %v1751 = vpop.permute.xlu0 %1750
    %1754 = vset.pattern.permute.xlu0 0
    %1755 = vperm.xlu0 %1754, %v1718
    %v1756 = vpop.permute.xlu0 %1755
    %1759 = vset.pattern.permute.xlu0 0
    %1760 = vperm.xlu0 %1759, %v1743
    %v1761 = vpop.permute.xlu0 %1760
    %1764 = vset.pattern.permute.xlu0 0
    %1765 = vperm.xlu0 %1764, %v1744
    %v1766 = vpop.permute.xlu0 %1765
    %v1768 = vsel %vm1747, %v1751, %v1761
    %v1769 = vsel %vm1747, %v1756, %v1766
    %vm1770 = vcmp.gt.f32.partialorder %v1661, 0.0
    %vm1771 = vcmp.gt.f32.partialorder %v1662, 0.0
    %v1772 = vrsqrt.pop %v1661
    %v1773 = vrsqrt.pop %v1662
    %v1774 = vsel %vm1770, %v1772, 10.0
    %v1775 = vsel %vm1771, %v1773, 10.0
    %1777 = vset.pattern.permute.xlu0 0
    %1778 = vperm.xlu0 %1777, %v1774
    %v1779 = vpop.permute.xlu0 %1778
    %1782 = vset.pattern.permute.xlu0 0
    %1783 = vperm.xlu0 %1782, %v1775
    %v1784 = vpop.permute.xlu0 %1783
    %v1786 = vmul.f32 %v1649, %v1779
    %v1787 = vmul.f32 %v1650, %v1784
    %1789 = vset.pattern.permute.xlu0 6
    %1790 = vperm.xlu0 %1789, %v1649
    %v1791 = vpop.permute.xlu0 %1790
    %1794 = vset.pattern.permute.xlu0 6
    %1795 = vperm.xlu0 %1794, %v1650
    %v1796 = vpop.permute.xlu0 %1795
    %v1798 = vmul.f32 %v1791, %v1786
    %v1799 = vmul.f32 %v1796, %v1787
    %1800 = vrot.lane.b32.xlu0 %v1649, 126
    %v1801 = vpop.permute.xlu0 %1800
    %1802 = vrot.lane.b32.xlu0 %v1650, 126
    %v1803 = vpop.permute.xlu0 %1802
    %v1806 = vsub.f32 %v1798, %v1801
    %v1807 = vsub.f32 %v1799, %v1803
    %v1808 = vmul.f32 %v1806, 0.5
    %v1809 = vmul.f32 %v1807, 0.5
    %v1810 = vadd.f32 %v1768, %v1808
    %v1811 = vadd.f32 %v1769, %v1809
    %vm1812 = vcmask 15360
    %1813 = vst.msk [vmem:[%s7] sm:$0xff] %vm1812, %v1810
    %1814 = vst.msk [vmem:[%s7 + $0x8] sm:$0xff] %vm1812, %v1811
    // Predicated region
    $region30: #{pinnsf_forward.1} parent=1 // pred_check
      _
    $region31: #{pinnsf_forward.1} parent=1 // pred_check_branch
      %1816 = sbr.rel (0) target = $region33
    $region32: #{pinnsf_forward.1} parent=1 // pred_region
      _
    $region33: #{pinnsf_forward.1} parent=1 // pred_fallthru
      _
    // Predicated region
    $region34: #{pinnsf_forward.1} parent=1 // pred_check
      _
    $region35: #{pinnsf_forward.1} parent=1 // pred_check_branch
      %1818 = sbr.rel (0) target = $region37
    $region36: #{pinnsf_forward.1} parent=1 // pred_region
      %s1820 = ssub.s32 2048, 2048
      %1821 = vsyncadd [#allocation4], %s1820
      %s1822 = sshll.u32 [#allocation3], 4
      %s1823 = int_to_ptr.vmem [resolvable:$true] %s1822
      %1828 = dma.vmem_to_hbm [thread:$0]  %s1823, 2048, %s8, [#allocation4], 128, 128, 8
    $region37: #{pinnsf_forward.1} parent=1 // pred_fallthru
      _
    // Predicated region
    $region38: #{pinnsf_forward.1} parent=1 // pred_check
      _
    $region39: #{pinnsf_forward.1} parent=1 // pred_check_branch
      %1830 = sbr.rel (0) target = $region41
    $region40: #{pinnsf_forward.1} parent=1 // pred_region
      %s1832 = ssub.s32 2048, 2048
      %1833 = vsyncadd [#allocation6], %s1832
      %s1834 = sshll.u32 [#allocation5], 4
      %s1835 = int_to_ptr.vmem [resolvable:$true] %s1834
      %1840 = dma.vmem_to_hbm [thread:$0]  %s1835, 2048, %s9, [#allocation6], 128, 128, 8
    $region41: #{pinnsf_forward.1} parent=1 // pred_fallthru
      _
    // Predicated region
    $region42: #{pinnsf_forward.1} parent=1 // pred_check
      _
    $region43: #{pinnsf_forward.1} parent=1 // pred_check_branch
      %1842 = sbr.rel (0) target = $region45
    $region44: #{pinnsf_forward.1} parent=1 // pred_region
      _
    $region45: #{pinnsf_forward.1} parent=1 // pred_fallthru
      _
    // Predicated region
    $region46: #{pinnsf_forward.1} parent=1 // pred_check
      _
    $region47: #{pinnsf_forward.1} parent=1 // pred_check_branch
      %1844 = sbr.rel (0) target = $region49
    $region48: #{pinnsf_forward.1} parent=1 // pred_region
      %1845 = dma.done [#allocation4], 2048
    $region49: #{pinnsf_forward.1} parent=1 // pred_fallthru
      _
    // Predicated region
    $region50: #{pinnsf_forward.1} parent=1 // pred_check
      _
    $region51: #{pinnsf_forward.1} parent=1 // pred_check_branch
      %1847 = sbr.rel (0) target = $region53
    $region52: #{pinnsf_forward.1} parent=1 // pred_region
      %1848 = dma.done [#allocation6], 2048
    $region53: #{pinnsf_forward.1} parent=1 // pred_fallthru
      _
    %1849 = vsyncpa [#allocation4], 1
    %1850 = vsyncpa [#allocation6], 1

</llo_original>
